<compile_context>
chip_gen: v7x
topology: tpu7x:2x2x1
jax: 0.10.0
libtpu: 0.0.40
codegen_flags: <defaults>
</compile_context>

<pallas_src>
import math
import jax
import jax.numpy as jnp
import numpy as np
from jax.experimental import pallas as pl
from jax.experimental.pallas import tpu as pltpu

EPS = 1e-5  # torch.nn.LayerNorm default eps


def _layernorm(x, gamma, beta):
    mu = jnp.mean(x, axis=-1, keepdims=True)
    var = jnp.mean(jnp.square(x - mu), axis=-1, keepdims=True)  # biased, like torch
    return (x - mu) * jax.lax.rsqrt(var + EPS) * gamma + beta


def make_perceiver_attention_kernel(heads, dim_head, block_b, n1, n2, dim):
    inner = heads * dim_head
    nk = n1 + n2
    rows_x = block_b * n1
    rows_l = block_b * n2
    rows_k = block_b * nk

    def kernel(x_ref, lat_ref, g1_ref, b1_ref, g2_ref, b2_ref,
               wq_ref, wkv_ref, wo_ref, out_ref):
        # ---- LayerNorms in fp32 on flattened (rows, D) blocks ----
        xn = _layernorm(x_ref[...].reshape(rows_x, dim), g1_ref[...], b1_ref[...])
        ln = _layernorm(lat_ref[...].reshape(rows_l, dim), g2_ref[...], b2_ref[...])

        # ---- fused kv input: cat((x_n, latents_n), seq axis), per batch elem ----
        kv_in = jnp.concatenate(
            [xn.reshape(block_b, n1, dim), ln.reshape(block_b, n2, dim)], axis=1
        ).reshape(rows_k, dim).astype(jnp.bfloat16)
        ln_bf = ln.astype(jnp.bfloat16)

        # ---- two fused projection GEMMs (scale^2 folded into wq at prep time) ----
        q = jnp.dot(ln_bf, wq_ref[...],
                    preferred_element_type=jnp.float32)            # (rows_l, inner)
        kv = jnp.dot(kv_in, wkv_ref[...],
                     preferred_element_type=jnp.float32)           # (rows_k, 2*inner)
        q = q.astype(jnp.bfloat16)
        k = kv[:, :inner].astype(jnp.bfloat16)
        v = kv[:, inner:].astype(jnp.bfloat16)

        wo = wo_ref[...]                                           # (inner, dim) bf16

        # ---- per-head attention, single softmax over all n1+n2 keys ----
        # The output projection is folded in per head, so the accumulator stays
        # lane-dense (rows_l, dim) and the only store is the final block write.
        out_acc = jnp.zeros((rows_l, dim), dtype=jnp.float32)
        for h in range(heads):
            sl = slice(h * dim_head, (h + 1) * dim_head)
            qh = q[:, sl].reshape(block_b, n2, dim_head)
            kh = k[:, sl].reshape(block_b, nk, dim_head)
            vh = v[:, sl].reshape(block_b, nk, dim_head)

            s = jnp.einsum("bqd,bkd->bqk", qh, kh,
                           preferred_element_type=jnp.float32)     # (b, n2, nk)
            m = jnp.max(s, axis=-1, keepdims=True)
            e = jnp.exp(s - m)
            inv = pl.reciprocal(jnp.sum(e, axis=-1, keepdims=True), approx=True)
            o = jnp.einsum("bqk,bkd->bqd", e.astype(jnp.bfloat16), vh,
                           preferred_element_type=jnp.float32)     # (b, n2, dh)
            o = (o * inv).reshape(rows_l, dim_head).astype(jnp.bfloat16)

            out_acc = out_acc + jnp.dot(o, wo[sl, :],
                                        preferred_element_type=jnp.float32)

        out_ref[...] = out_acc.reshape(block_b, n2, dim)

    return kernel


def prepare_params(raw, *, heads, dim_head):
    """One-time parameter prep (hoisted out of the per-call wrapper):
    fold the attention scale into wq ((q*s) @ (k*s)^T == s^2 * q @ k^T) and
    cast all matmul weights to bf16."""
    scale2 = 1.0 / math.sqrt(dim_head)
    return {
        "g1": raw["g1"].astype(jnp.float32),
        "b1": raw["b1"].astype(jnp.float32),
        "g2": raw["g2"].astype(jnp.float32),
        "b2": raw["b2"].astype(jnp.float32),
        "wq": (raw["wq"] * scale2).astype(jnp.bfloat16),
        "wkv": raw["wkv"].astype(jnp.bfloat16),
        "wo": raw["wo"].astype(jnp.bfloat16),
    }


def _vmem_bytes_estimate(block_b, n1, n2, dim, inner, heads):
    f32, bf16 = 4, 2
    nk = n1 + n2
    rx, rl, rk = block_b * n1, block_b * n2, block_b * nk
    io = 2 * (rx * dim + 2 * rl * dim) * f32                  # x, latents, out (double-buffered)
    w = 2 * (dim * inner + dim * 2 * inner + inner * dim) * bf16
    inter = (rk * dim * (f32 + bf16)                          # normalized kv input
             + rk * 2 * inner * (f32 + bf16)                  # kv projection
             + rl * inner * (f32 + bf16)                      # q projection
             + 2 * block_b * n2 * nk * f32                    # one head's scores / exp
             + rl * dim * f32)                                # output accumulator
    return io + w + inter


def perceiver_attention(x, latents, prep, *, heads, dim_head, block_b=None):
    """prep: output of prepare_params()."""
    B, n1, D = x.shape
    Bl, n2, Dl = latents.shape
    assert B == Bl and D == Dl
    inner = heads * dim_head
    nk = n1 + n2

    # ---- block_b: target >= ~512 combined kv rows, keep >=2 grid steps for
    # megacore, and fit a conservative VMEM budget (v7x has 64 MiB physical). ----
    VMEM_BUDGET = 40 * 2 ** 20
    if block_b is None:
        block_b = max(1, 512 // max(1, nk))
    if B >= 2:
        block_b = min(block_b, pl.cdiv(B, 2))
    block_b = max(1, min(block_b, B))
    while block_b > 1 and _vmem_bytes_estimate(block_b, n1, n2, D, inner, heads) > VMEM_BUDGET:
        block_b = max(1, block_b // 2)

    grid_b = pl.cdiv(B, block_b)
    B_pad = grid_b * block_b
    if B_pad != B:
        pad = B_pad - B
        x = jnp.pad(x, ((0, pad), (0, 0), (0, 0)))
        latents = jnp.pad(latents, ((0, pad), (0, 0), (0, 0)))

    est = _vmem_bytes_estimate(block_b, n1, n2, D, inner, heads)
    vmem_limit = int(max(32 * 2 ** 20, min(2 * est, 56 * 2 ** 20)))

    kernel = make_perceiver_attention_kernel(heads, dim_head, block_b, n1, n2, D)

    def bcast(shape):
        return pl.BlockSpec(shape, lambda b: (0,) * len(shape))

    out = pl.pallas_call(
        kernel,
        out_shape=jax.ShapeDtypeStruct((B_pad, n2, D), jnp.float32),
        grid=(grid_b,),
        in_specs=[
            pl.BlockSpec((block_b, n1, D), lambda b: (b, 0, 0)),   # x
            pl.BlockSpec((block_b, n2, D), lambda b: (b, 0, 0)),   # latents
            bcast((1, D)), bcast((1, D)),                          # norm1 gamma/beta
            bcast((1, D)), bcast((1, D)),                          # norm2 gamma/beta
            bcast((D, inner)),                                     # wq (scale folded, bf16)
            bcast((D, 2 * inner)),                                 # wkv (bf16)
            bcast((inner, D)),                                     # wo (bf16)
        ],
        out_specs=pl.BlockSpec((block_b, n2, D), lambda b: (b, 0, 0)),
        compiler_params=pltpu.CompilerParams(
            dimension_semantics=("parallel",),
            vmem_limit_bytes=vmem_limit),
    )(x, latents, prep["g1"], prep["b1"], prep["g2"], prep["b2"],
      prep["wq"], prep["wkv"], prep["wo"])

    return out[:B] if B_pad != B else out


def reference_forward(x, latents, p, *, heads, dim_head):
    """Pure-JAX fp32 reference mirroring the PyTorch forward exactly."""
    scale = 1.0 / math.sqrt(math.sqrt(dim_head))
    inner = heads * dim_head

    def ln(t, g, b):
        mu = t.mean(-1, keepdims=True)
        var = ((t - mu) ** 2).mean(-1, keepdims=True)
        return (t - mu) / jnp.sqrt(var + EPS) * g + b

    xn = ln(x, p["g1"][0], p["b1"][0])
    latn = ln(latents, p["g2"][0], p["b2"][0])
    bsz, l, _ = latn.shape
    q = latn @ p["wq"]
    kv_in = jnp.concatenate([xn, latn], axis=-2)
    kv = kv_in @ p["wkv"]
    k, v = kv[..., :inner], kv[..., inner:]

    def rshape(t):
        b_, n_, _ = t.shape
        return t.reshape(b_, n_, heads, -1).transpose(0, 2, 1, 3)

    q, k, v = rshape(q), rshape(k), rshape(v)
    w = jnp.einsum("bhqd,bhkd->bhqk", q * scale, k * scale)
    w = jax.nn.softmax(w.astype(jnp.float32), axis=-1)
    out = jnp.einsum("bhqk,bhkd->bhqd", w, v)
    out = out.transpose(0, 2, 1, 3).reshape(bsz, l, -1)
    return out @ p["wo"]


if __name__ == "__main__":
    # Small shapes consistent with the module
    B, N1, N2 = 4, 16, 8          # batch, image-feature seq, latent seq
    D = 32                        # dim
    HEADS, DIM_HEAD = 4, 8        # heads, dim_head -> inner_dim = 32
    INNER = HEADS * DIM_HEAD

    key = jax.random.PRNGKey(0)
    ks = jax.random.split(key, 9)

    x = jax.random.normal(ks[0], (B, N1, D), dtype=jnp.float32)
    latents = jax.random.normal(ks[1], (B, N2, D), dtype=jnp.float32)

    params = {
        # LayerNorm params (stored as (1, D) for 2-D VMEM tiles)
        "g1": 1.0 + 0.05 * jax.random.normal(ks[2], (1, D), dtype=jnp.float32),
        "b1": 0.05 * jax.random.normal(ks[3], (1, D), dtype=jnp.float32),
        "g2": 1.0 + 0.05 * jax.random.normal(ks[4], (1, D), dtype=jnp.float32),
        "b2": 0.05 * jax.random.normal(ks[5], (1, D), dtype=jnp.float32),
        # Linear weights, pre-transposed to (in, out)
        "wq":  jax.random.normal(ks[6], (D, INNER), dtype=jnp.float32) / math.sqrt(D),
        "wkv": jax.random.normal(ks[7], (D, 2 * INNER), dtype=jnp.float32) / math.sqrt(D),
        "wo":  jax.random.normal(ks[8], (INNER, D), dtype=jnp.float32) / math.sqrt(INNER),
    }

    # One-time weight prep (scale fold + bf16 casts), hoisted out of the call.
    prep = jax.tree_util.tree_map(jax.block_until_ready,
                                  prepare_params(params, heads=HEADS, dim_head=DIM_HEAD))

    # Heuristic picks block_b=2 -> grid=(2,), so the parallel batch axis has
    # two independent steps (both v7x TensorCores get work).
    out = perceiver_attention(x, latents, prep, heads=HEADS, dim_head=DIM_HEAD)
    out = jax.block_until_ready(out)

    ref = reference_forward(x, latents, params, heads=HEADS, dim_head=DIM_HEAD)
    ref = jax.block_until_ready(ref)

    # bf16 MXU operands + approx reciprocal vs fp32 reference -> looser tolerance.
    np.testing.assert_allclose(np.asarray(out), np.asarray(ref), rtol=5e-2, atol=5e-2)
    print("KERNEL_OK")
</pallas_src>

<mosaic_0001>
module attributes {stable_mosaic.version = 11 : i64} {
  func.func @kernel(%arg0: i32, %arg1: memref<2x16x32xf32, #tpu.memory_space<vmem>>, %arg2: memref<2x8x32xf32, #tpu.memory_space<vmem>>, %arg3: memref<1x32xf32, #tpu.memory_space<vmem>>, %arg4: memref<1x32xf32, #tpu.memory_space<vmem>>, %arg5: memref<1x32xf32, #tpu.memory_space<vmem>>, %arg6: memref<1x32xf32, #tpu.memory_space<vmem>>, %arg7: memref<32x32xbf16, #tpu.memory_space<vmem>>, %arg8: memref<32x64xbf16, #tpu.memory_space<vmem>>, %arg9: memref<32x32xbf16, #tpu.memory_space<vmem>>, %arg10: memref<2x8x32xf32, #tpu.memory_space<vmem>>) attributes {dimension_semantics = [#tpu.dimension_semantics<parallel>], iteration_bounds = array<i64: 2>, scalar_prefetch = 0 : i64, scratch_operands = 0 : i64, tpu.core_type = #tpu.core_type<tc>, window_params = [{transform_indices = @transform_0, window_bounds = array<i64: 2, 16, 32>}, {transform_indices = @transform_1, window_bounds = array<i64: 2, 8, 32>}, {pipeline_mode = #tpu.pipeline_mode<synchronous>, transform_indices = @transform_2, window_bounds = array<i64: 1, 32>}, {pipeline_mode = #tpu.pipeline_mode<synchronous>, transform_indices = @transform_3, window_bounds = array<i64: 1, 32>}, {pipeline_mode = #tpu.pipeline_mode<synchronous>, transform_indices = @transform_4, window_bounds = array<i64: 1, 32>}, {pipeline_mode = #tpu.pipeline_mode<synchronous>, transform_indices = @transform_5, window_bounds = array<i64: 1, 32>}, {pipeline_mode = #tpu.pipeline_mode<synchronous>, transform_indices = @transform_6, window_bounds = array<i64: 32, 32>}, {pipeline_mode = #tpu.pipeline_mode<synchronous>, transform_indices = @transform_7, window_bounds = array<i64: 32, 64>}, {pipeline_mode = #tpu.pipeline_mode<synchronous>, transform_indices = @transform_8, window_bounds = array<i64: 32, 32>}, {transform_indices = @transform_9, window_bounds = array<i64: 2, 8, 32>}]} {
    %c0 = arith.constant 0 : index
    %c0_0 = arith.constant 0 : index
    %c0_1 = arith.constant 0 : index
    %0 = vector.load %arg1[%c0, %c0_0, %c0_1] : memref<2x16x32xf32, #tpu.memory_space<vmem>>, vector<2x16x32xf32>
    %1 = vector.shape_cast %0 : vector<2x16x32xf32> to vector<32x32xf32>
    %c0_2 = arith.constant 0 : index
    %c0_3 = arith.constant 0 : index
    %2 = vector.load %arg3[%c0_2, %c0_3] : memref<1x32xf32, #tpu.memory_space<vmem>>, vector<1x32xf32>
    %c0_4 = arith.constant 0 : index
    %c0_5 = arith.constant 0 : index
    %3 = vector.load %arg4[%c0_4, %c0_5] : memref<1x32xf32, #tpu.memory_space<vmem>>, vector<1x32xf32>
    %cst = arith.constant dense<0.000000e+00> : vector<32xf32>
    %4 = vector.multi_reduction <add>, %1, %cst [1] : vector<32x32xf32> to vector<32xf32>
    %5 = vector.shape_cast %4 : vector<32xf32> to vector<32x1xf32>
    %cst_6 = arith.constant 3.200000e+01 : f32
    %6 = vector.broadcast %cst_6 : f32 to vector<32x1xf32>
    %7 = arith.divf %5, %6 : vector<32x1xf32>
    %8 = vector.broadcast %7 : vector<32x1xf32> to vector<32x32xf32>
    %9 = arith.subf %1, %8 : vector<32x32xf32>
    %10 = arith.mulf %9, %9 : vector<32x32xf32>
    %cst_7 = arith.constant dense<0.000000e+00> : vector<32xf32>
    %11 = vector.multi_reduction <add>, %10, %cst_7 [1] : vector<32x32xf32> to vector<32xf32>
    %12 = vector.shape_cast %11 : vector<32xf32> to vector<32x1xf32>
    %cst_8 = arith.constant 3.200000e+01 : f32
    %13 = vector.broadcast %cst_8 : f32 to vector<32x1xf32>
    %14 = arith.divf %12, %13 : vector<32x1xf32>
    %15 = vector.broadcast %7 : vector<32x1xf32> to vector<32x32xf32>
    %16 = arith.subf %1, %15 : vector<32x32xf32>
    %cst_9 = arith.constant 9.99999974E-6 : f32
    %17 = vector.broadcast %cst_9 : f32 to vector<32x1xf32>
    %18 = arith.addf %14, %17 : vector<32x1xf32>
    %19 = math.rsqrt %18 : vector<32x1xf32>
    %20 = vector.broadcast %19 : vector<32x1xf32> to vector<32x32xf32>
    %21 = arith.mulf %16, %20 : vector<32x32xf32>
    %22 = vector.broadcast %2 : vector<1x32xf32> to vector<32x32xf32>
    %23 = arith.mulf %21, %22 : vector<32x32xf32>
    %24 = vector.broadcast %3 : vector<1x32xf32> to vector<32x32xf32>
    %25 = arith.addf %23, %24 : vector<32x32xf32>
    %c0_10 = arith.constant 0 : index
    %c0_11 = arith.constant 0 : index
    %c0_12 = arith.constant 0 : index
    %26 = vector.load %arg2[%c0_10, %c0_11, %c0_12] : memref<2x8x32xf32, #tpu.memory_space<vmem>>, vector<2x8x32xf32>
    %27 = vector.shape_cast %26 : vector<2x8x32xf32> to vector<16x32xf32>
    %c0_13 = arith.constant 0 : index
    %c0_14 = arith.constant 0 : index
    %28 = vector.load %arg5[%c0_13, %c0_14] : memref<1x32xf32, #tpu.memory_space<vmem>>, vector<1x32xf32>
    %c0_15 = arith.constant 0 : index
    %c0_16 = arith.constant 0 : index
    %29 = vector.load %arg6[%c0_15, %c0_16] : memref<1x32xf32, #tpu.memory_space<vmem>>, vector<1x32xf32>
    %cst_17 = arith.constant dense<0.000000e+00> : vector<16xf32>
    %30 = vector.multi_reduction <add>, %27, %cst_17 [1] : vector<16x32xf32> to vector<16xf32>
    %31 = vector.shape_cast %30 : vector<16xf32> to vector<16x1xf32>
    %cst_18 = arith.constant 3.200000e+01 : f32
    %32 = vector.broadcast %cst_18 : f32 to vector<16x1xf32>
    %33 = arith.divf %31, %32 : vector<16x1xf32>
    %34 = vector.broadcast %33 : vector<16x1xf32> to vector<16x32xf32>
    %35 = arith.subf %27, %34 : vector<16x32xf32>
    %36 = arith.mulf %35, %35 : vector<16x32xf32>
    %cst_19 = arith.constant dense<0.000000e+00> : vector<16xf32>
    %37 = vector.multi_reduction <add>, %36, %cst_19 [1] : vector<16x32xf32> to vector<16xf32>
    %38 = vector.shape_cast %37 : vector<16xf32> to vector<16x1xf32>
    %cst_20 = arith.constant 3.200000e+01 : f32
    %39 = vector.broadcast %cst_20 : f32 to vector<16x1xf32>
    %40 = arith.divf %38, %39 : vector<16x1xf32>
    %41 = vector.broadcast %33 : vector<16x1xf32> to vector<16x32xf32>
    %42 = arith.subf %27, %41 : vector<16x32xf32>
    %cst_21 = arith.constant 9.99999974E-6 : f32
    %43 = vector.broadcast %cst_21 : f32 to vector<16x1xf32>
    %44 = arith.addf %40, %43 : vector<16x1xf32>
    %45 = math.rsqrt %44 : vector<16x1xf32>
    %46 = vector.broadcast %45 : vector<16x1xf32> to vector<16x32xf32>
    %47 = arith.mulf %42, %46 : vector<16x32xf32>
    %48 = vector.broadcast %28 : vector<1x32xf32> to vector<16x32xf32>
    %49 = arith.mulf %47, %48 : vector<16x32xf32>
    %50 = vector.broadcast %29 : vector<1x32xf32> to vector<16x32xf32>
    %51 = arith.addf %49, %50 : vector<16x32xf32>
    %52 = vector.shape_cast %25 : vector<32x32xf32> to vector<2x16x32xf32>
    %53 = vector.shape_cast %51 : vector<16x32xf32> to vector<2x8x32xf32>
    %54 = tpu.concatenate %52, %53 in 1 : vector<2x16x32xf32>, vector<2x8x32xf32> -> vector<2x24x32xf32>
    %55 = vector.shape_cast %54 : vector<2x24x32xf32> to vector<48x32xf32>
    %56 = arith.truncf %55 : vector<48x32xf32> to vector<48x32xbf16>
    %57 = arith.truncf %51 : vector<16x32xf32> to vector<16x32xbf16>
    %c0_22 = arith.constant 0 : index
    %c0_23 = arith.constant 0 : index
    %58 = vector.load %arg7[%c0_22, %c0_23] : memref<32x32xbf16, #tpu.memory_space<vmem>>, vector<32x32xbf16>
    %cst_24 = arith.constant dense<0.000000e+00> : vector<16x32xf32>
    %59 = tpu.matmul %57, %58, %cst_24 {dimension_numbers = #tpu.dot_dimension_numbers<[1], [0], [0], [1], [0, 0, 1, 1], [], []>} : vector<16x32xbf16>, vector<32x32xbf16>, vector<16x32xf32> -> vector<16x32xf32>
    %c0_25 = arith.constant 0 : index
    %c0_26 = arith.constant 0 : index
    %60 = vector.load %arg8[%c0_25, %c0_26] : memref<32x64xbf16, #tpu.memory_space<vmem>>, vector<32x64xbf16>
    %cst_27 = arith.constant dense<0.000000e+00> : vector<48x64xf32>
    %61 = tpu.matmul %56, %60, %cst_27 {dimension_numbers = #tpu.dot_dimension_numbers<[1], [0], [0], [1], [0, 0, 1, 1], [], []>} : vector<48x32xbf16>, vector<32x64xbf16>, vector<48x64xf32> -> vector<48x64xf32>
    %62 = arith.truncf %59 : vector<16x32xf32> to vector<16x32xbf16>
    %63 = vector.extract_strided_slice %61 {offsets = [0, 0], sizes = [48, 32], strides = [1, 1]} : vector<48x64xf32> to vector<48x32xf32>
    %64 = arith.truncf %63 : vector<48x32xf32> to vector<48x32xbf16>
    %65 = vector.extract_strided_slice %61 {offsets = [0, 32], sizes = [48, 32], strides = [1, 1]} : vector<48x64xf32> to vector<48x32xf32>
    %66 = arith.truncf %65 : vector<48x32xf32> to vector<48x32xbf16>
    %c0_28 = arith.constant 0 : index
    %c0_29 = arith.constant 0 : index
    %67 = vector.load %arg9[%c0_28, %c0_29] : memref<32x32xbf16, #tpu.memory_space<vmem>>, vector<32x32xbf16>
    %cst_30 = arith.constant 0.000000e+00 : f32
    %68 = vector.broadcast %cst_30 : f32 to vector<16x32xf32>
    %69 = vector.extract_strided_slice %62 {offsets = [0, 0], sizes = [16, 8], strides = [1, 1]} : vector<16x32xbf16> to vector<16x8xbf16>
    %70 = vector.shape_cast %69 : vector<16x8xbf16> to vector<2x8x8xbf16>
    %71 = vector.extract_strided_slice %64 {offsets = [0, 0], sizes = [48, 8], strides = [1, 1]} : vector<48x32xbf16> to vector<48x8xbf16>
    %72 = vector.shape_cast %71 : vector<48x8xbf16> to vector<2x24x8xbf16>
    %73 = vector.extract_strided_slice %66 {offsets = [0, 0], sizes = [48, 8], strides = [1, 1]} : vector<48x32xbf16> to vector<48x8xbf16>
    %74 = vector.shape_cast %73 : vector<48x8xbf16> to vector<2x24x8xbf16>
    "tpu.trace_start"() <{level = 10 : i32, message = "bqd,bkd->bqk"}> : () -> ()
    %cst_31 = arith.constant dense<0.000000e+00> : vector<2x8x24xf32>
    %75 = tpu.matmul %70, %72, %cst_31 {dimension_numbers = #tpu.dot_dimension_numbers<[2], [2], [1], [1], [0, 0, 0, 1, 1, 1], [0], [0]>} : vector<2x8x8xbf16>, vector<2x24x8xbf16>, vector<2x8x24xf32> -> vector<2x8x24xf32>
    "tpu.trace_stop"() : () -> ()
    %cst_32 = arith.constant dense<0xFF800000> : vector<2x8xf32>
    %76 = vector.multi_reduction <maximumf>, %75, %cst_32 [2] : vector<2x8x24xf32> to vector<2x8xf32>
    %77 = vector.shape_cast %76 : vector<2x8xf32> to vector<2x8x1xf32>
    %78 = vector.broadcast %77 : vector<2x8x1xf32> to vector<2x8x24xf32>
    %79 = arith.subf %75, %78 : vector<2x8x24xf32>
    %80 = math.exp %79 : vector<2x8x24xf32>
    %cst_33 = arith.constant dense<0.000000e+00> : vector<2x8xf32>
    %81 = vector.multi_reduction <add>, %80, %cst_33 [2] : vector<2x8x24xf32> to vector<2x8xf32>
    %82 = vector.shape_cast %81 : vector<2x8xf32> to vector<2x8x1xf32>
    %83 = tpu.reciprocal %82 {approx = true} : vector<2x8x1xf32> -> vector<2x8x1xf32>
    %84 = arith.truncf %80 : vector<2x8x24xf32> to vector<2x8x24xbf16>
    "tpu.trace_start"() <{level = 10 : i32, message = "bqk,bkd->bqd"}> : () -> ()
    %cst_34 = arith.constant dense<0.000000e+00> : vector<2x8x8xf32>
    %85 = tpu.matmul %84, %74, %cst_34 {dimension_numbers = #tpu.dot_dimension_numbers<[2], [1], [1], [2], [0, 0, 0, 1, 1, 2], [0], [0]>} : vector<2x8x24xbf16>, vector<2x24x8xbf16>, vector<2x8x8xf32> -> vector<2x8x8xf32>
    "tpu.trace_stop"() : () -> ()
    %86 = vector.broadcast %83 : vector<2x8x1xf32> to vector<2x8x8xf32>
    %87 = arith.mulf %85, %86 : vector<2x8x8xf32>
    %88 = vector.shape_cast %87 : vector<2x8x8xf32> to vector<16x8xf32>
    %89 = arith.truncf %88 : vector<16x8xf32> to vector<16x8xbf16>
    %90 = vector.extract_strided_slice %67 {offsets = [0, 0], sizes = [8, 32], strides = [1, 1]} : vector<32x32xbf16> to vector<8x32xbf16>
    %cst_35 = arith.constant dense<0.000000e+00> : vector<16x32xf32>
    %91 = tpu.matmul %89, %90, %cst_35 {dimension_numbers = #tpu.dot_dimension_numbers<[1], [0], [0], [1], [0, 0, 1, 1], [], []>} : vector<16x8xbf16>, vector<8x32xbf16>, vector<16x32xf32> -> vector<16x32xf32>
    %92 = arith.addf %68, %91 : vector<16x32xf32>
    %93 = vector.extract_strided_slice %62 {offsets = [0, 8], sizes = [16, 8], strides = [1, 1]} : vector<16x32xbf16> to vector<16x8xbf16>
    %94 = vector.shape_cast %93 : vector<16x8xbf16> to vector<2x8x8xbf16>
    %95 = vector.extract_strided_slice %64 {offsets = [0, 8], sizes = [48, 8], strides = [1, 1]} : vector<48x32xbf16> to vector<48x8xbf16>
    %96 = vector.shape_cast %95 : vector<48x8xbf16> to vector<2x24x8xbf16>
    %97 = vector.extract_strided_slice %66 {offsets = [0, 8], sizes = [48, 8], strides = [1, 1]} : vector<48x32xbf16> to vector<48x8xbf16>
    %98 = vector.shape_cast %97 : vector<48x8xbf16> to vector<2x24x8xbf16>
    "tpu.trace_start"() <{level = 10 : i32, message = "bqd,bkd->bqk"}> : () -> ()
    %cst_36 = arith.constant dense<0.000000e+00> : vector<2x8x24xf32>
    %99 = tpu.matmul %94, %96, %cst_36 {dimension_numbers = #tpu.dot_dimension_numbers<[2], [2], [1], [1], [0, 0, 0, 1, 1, 1], [0], [0]>} : vector<2x8x8xbf16>, vector<2x24x8xbf16>, vector<2x8x24xf32> -> vector<2x8x24xf32>
    "tpu.trace_stop"() : () -> ()
    %cst_37 = arith.constant dense<0xFF800000> : vector<2x8xf32>
    %100 = vector.multi_reduction <maximumf>, %99, %cst_37 [2] : vector<2x8x24xf32> to vector<2x8xf32>
    %101 = vector.shape_cast %100 : vector<2x8xf32> to vector<2x8x1xf32>
    %102 = vector.broadcast %101 : vector<2x8x1xf32> to vector<2x8x24xf32>
    %103 = arith.subf %99, %102 : vector<2x8x24xf32>
    %104 = math.exp %103 : vector<2x8x24xf32>
    %cst_38 = arith.constant dense<0.000000e+00> : vector<2x8xf32>
    %105 = vector.multi_reduction <add>, %104, %cst_38 [2] : vector<2x8x24xf32> to vector<2x8xf32>
    %106 = vector.shape_cast %105 : vector<2x8xf32> to vector<2x8x1xf32>
    %107 = tpu.reciprocal %106 {approx = true} : vector<2x8x1xf32> -> vector<2x8x1xf32>
    %108 = arith.truncf %104 : vector<2x8x24xf32> to vector<2x8x24xbf16>
    "tpu.trace_start"() <{level = 10 : i32, message = "bqk,bkd->bqd"}> : () -> ()
    %cst_39 = arith.constant dense<0.000000e+00> : vector<2x8x8xf32>
    %109 = tpu.matmul %108, %98, %cst_39 {dimension_numbers = #tpu.dot_dimension_numbers<[2], [1], [1], [2], [0, 0, 0, 1, 1, 2], [0], [0]>} : vector<2x8x24xbf16>, vector<2x24x8xbf16>, vector<2x8x8xf32> -> vector<2x8x8xf32>
    "tpu.trace_stop"() : () -> ()
    %110 = vector.broadcast %107 : vector<2x8x1xf32> to vector<2x8x8xf32>
    %111 = arith.mulf %109, %110 : vector<2x8x8xf32>
    %112 = vector.shape_cast %111 : vector<2x8x8xf32> to vector<16x8xf32>
    %113 = arith.truncf %112 : vector<16x8xf32> to vector<16x8xbf16>
    %114 = vector.extract_strided_slice %67 {offsets = [8, 0], sizes = [8, 32], strides = [1, 1]} : vector<32x32xbf16> to vector<8x32xbf16>
    %cst_40 = arith.constant dense<0.000000e+00> : vector<16x32xf32>
    %115 = tpu.matmul %113, %114, %cst_40 {dimension_numbers = #tpu.dot_dimension_numbers<[1], [0], [0], [1], [0, 0, 1, 1], [], []>} : vector<16x8xbf16>, vector<8x32xbf16>, vector<16x32xf32> -> vector<16x32xf32>
    %116 = arith.addf %92, %115 : vector<16x32xf32>
    %117 = vector.extract_strided_slice %62 {offsets = [0, 16], sizes = [16, 8], strides = [1, 1]} : vector<16x32xbf16> to vector<16x8xbf16>
    %118 = vector.shape_cast %117 : vector<16x8xbf16> to vector<2x8x8xbf16>
    %119 = vector.extract_strided_slice %64 {offsets = [0, 16], sizes = [48, 8], strides = [1, 1]} : vector<48x32xbf16> to vector<48x8xbf16>
    %120 = vector.shape_cast %119 : vector<48x8xbf16> to vector<2x24x8xbf16>
    %121 = vector.extract_strided_slice %66 {offsets = [0, 16], sizes = [48, 8], strides = [1, 1]} : vector<48x32xbf16> to vector<48x8xbf16>
    %122 = vector.shape_cast %121 : vector<48x8xbf16> to vector<2x24x8xbf16>
    "tpu.trace_start"() <{level = 10 : i32, message = "bqd,bkd->bqk"}> : () -> ()
    %cst_41 = arith.constant dense<0.000000e+00> : vector<2x8x24xf32>
    %123 = tpu.matmul %118, %120, %cst_41 {dimension_numbers = #tpu.dot_dimension_numbers<[2], [2], [1], [1], [0, 0, 0, 1, 1, 1], [0], [0]>} : vector<2x8x8xbf16>, vector<2x24x8xbf16>, vector<2x8x24xf32> -> vector<2x8x24xf32>
    "tpu.trace_stop"() : () -> ()
    %cst_42 = arith.constant dense<0xFF800000> : vector<2x8xf32>
    %124 = vector.multi_reduction <maximumf>, %123, %cst_42 [2] : vector<2x8x24xf32> to vector<2x8xf32>
    %125 = vector.shape_cast %124 : vector<2x8xf32> to vector<2x8x1xf32>
    %126 = vector.broadcast %125 : vector<2x8x1xf32> to vector<2x8x24xf32>
    %127 = arith.subf %123, %126 : vector<2x8x24xf32>
    %128 = math.exp %127 : vector<2x8x24xf32>
    %cst_43 = arith.constant dense<0.000000e+00> : vector<2x8xf32>
    %129 = vector.multi_reduction <add>, %128, %cst_43 [2] : vector<2x8x24xf32> to vector<2x8xf32>
    %130 = vector.shape_cast %129 : vector<2x8xf32> to vector<2x8x1xf32>
    %131 = tpu.reciprocal %130 {approx = true} : vector<2x8x1xf32> -> vector<2x8x1xf32>
    %132 = arith.truncf %128 : vector<2x8x24xf32> to vector<2x8x24xbf16>
    "tpu.trace_start"() <{level = 10 : i32, message = "bqk,bkd->bqd"}> : () -> ()
    %cst_44 = arith.constant dense<0.000000e+00> : vector<2x8x8xf32>
    %133 = tpu.matmul %132, %122, %cst_44 {dimension_numbers = #tpu.dot_dimension_numbers<[2], [1], [1], [2], [0, 0, 0, 1, 1, 2], [0], [0]>} : vector<2x8x24xbf16>, vector<2x24x8xbf16>, vector<2x8x8xf32> -> vector<2x8x8xf32>
    "tpu.trace_stop"() : () -> ()
    %134 = vector.broadcast %131 : vector<2x8x1xf32> to vector<2x8x8xf32>
    %135 = arith.mulf %133, %134 : vector<2x8x8xf32>
    %136 = vector.shape_cast %135 : vector<2x8x8xf32> to vector<16x8xf32>
    %137 = arith.truncf %136 : vector<16x8xf32> to vector<16x8xbf16>
    %138 = vector.extract_strided_slice %67 {offsets = [16, 0], sizes = [8, 32], strides = [1, 1]} : vector<32x32xbf16> to vector<8x32xbf16>
    %cst_45 = arith.constant dense<0.000000e+00> : vector<16x32xf32>
    %139 = tpu.matmul %137, %138, %cst_45 {dimension_numbers = #tpu.dot_dimension_numbers<[1], [0], [0], [1], [0, 0, 1, 1], [], []>} : vector<16x8xbf16>, vector<8x32xbf16>, vector<16x32xf32> -> vector<16x32xf32>
    %140 = arith.addf %116, %139 : vector<16x32xf32>
    %141 = vector.extract_strided_slice %62 {offsets = [0, 24], sizes = [16, 8], strides = [1, 1]} : vector<16x32xbf16> to vector<16x8xbf16>
    %142 = vector.shape_cast %141 : vector<16x8xbf16> to vector<2x8x8xbf16>
    %143 = vector.extract_strided_slice %64 {offsets = [0, 24], sizes = [48, 8], strides = [1, 1]} : vector<48x32xbf16> to vector<48x8xbf16>
    %144 = vector.shape_cast %143 : vector<48x8xbf16> to vector<2x24x8xbf16>
    %145 = vector.extract_strided_slice %66 {offsets = [0, 24], sizes = [48, 8], strides = [1, 1]} : vector<48x32xbf16> to vector<48x8xbf16>
    %146 = vector.shape_cast %145 : vector<48x8xbf16> to vector<2x24x8xbf16>
    "tpu.trace_start"() <{level = 10 : i32, message = "bqd,bkd->bqk"}> : () -> ()
    %cst_46 = arith.constant dense<0.000000e+00> : vector<2x8x24xf32>
    %147 = tpu.matmul %142, %144, %cst_46 {dimension_numbers = #tpu.dot_dimension_numbers<[2], [2], [1], [1], [0, 0, 0, 1, 1, 1], [0], [0]>} : vector<2x8x8xbf16>, vector<2x24x8xbf16>, vector<2x8x24xf32> -> vector<2x8x24xf32>
    "tpu.trace_stop"() : () -> ()
    %cst_47 = arith.constant dense<0xFF800000> : vector<2x8xf32>
    %148 = vector.multi_reduction <maximumf>, %147, %cst_47 [2] : vector<2x8x24xf32> to vector<2x8xf32>
    %149 = vector.shape_cast %148 : vector<2x8xf32> to vector<2x8x1xf32>
    %150 = vector.broadcast %149 : vector<2x8x1xf32> to vector<2x8x24xf32>
    %151 = arith.subf %147, %150 : vector<2x8x24xf32>
    %152 = math.exp %151 : vector<2x8x24xf32>
    %cst_48 = arith.constant dense<0.000000e+00> : vector<2x8xf32>
    %153 = vector.multi_reduction <add>, %152, %cst_48 [2] : vector<2x8x24xf32> to vector<2x8xf32>
    %154 = vector.shape_cast %153 : vector<2x8xf32> to vector<2x8x1xf32>
    %155 = tpu.reciprocal %154 {approx = true} : vector<2x8x1xf32> -> vector<2x8x1xf32>
    %156 = arith.truncf %152 : vector<2x8x24xf32> to vector<2x8x24xbf16>
    "tpu.trace_start"() <{level = 10 : i32, message = "bqk,bkd->bqd"}> : () -> ()
    %cst_49 = arith.constant dense<0.000000e+00> : vector<2x8x8xf32>
    %157 = tpu.matmul %156, %146, %cst_49 {dimension_numbers = #tpu.dot_dimension_numbers<[2], [1], [1], [2], [0, 0, 0, 1, 1, 2], [0], [0]>} : vector<2x8x24xbf16>, vector<2x24x8xbf16>, vector<2x8x8xf32> -> vector<2x8x8xf32>
    "tpu.trace_stop"() : () -> ()
    %158 = vector.broadcast %155 : vector<2x8x1xf32> to vector<2x8x8xf32>
    %159 = arith.mulf %157, %158 : vector<2x8x8xf32>
    %160 = vector.shape_cast %159 : vector<2x8x8xf32> to vector<16x8xf32>
    %161 = arith.truncf %160 : vector<16x8xf32> to vector<16x8xbf16>
    %162 = vector.extract_strided_slice %67 {offsets = [24, 0], sizes = [8, 32], strides = [1, 1]} : vector<32x32xbf16> to vector<8x32xbf16>
    %cst_50 = arith.constant dense<0.000000e+00> : vector<16x32xf32>
    %163 = tpu.matmul %161, %162, %cst_50 {dimension_numbers = #tpu.dot_dimension_numbers<[1], [0], [0], [1], [0, 0, 1, 1], [], []>} : vector<16x8xbf16>, vector<8x32xbf16>, vector<16x32xf32> -> vector<16x32xf32>
    %164 = arith.addf %140, %163 : vector<16x32xf32>
    %165 = vector.shape_cast %164 : vector<16x32xf32> to vector<2x8x32xf32>
    %c0_51 = arith.constant 0 : index
    %c0_52 = arith.constant 0 : index
    %c0_53 = arith.constant 0 : index
    %166 = vector.load %arg10[%c0_51, %c0_52, %c0_53] : memref<2x8x32xf32, #tpu.memory_space<vmem>>, vector<2x8x32xf32>
    tpu.vector_store %arg10[%c0_51, %c0_52, %c0_53], %165 {strides = array<i32>} : memref<2x8x32xf32, #tpu.memory_space<vmem>>, vector<2x8x32xf32>,
    return
  }
  func.func @transform_0(%arg0: i32) -> (i32, i32, i32) {
    %c0_i32 = arith.constant 0 : i32
    %c0_i32_0 = arith.constant 0 : i32
    %c0_i32_1 = arith.constant 0 : i32
    return %arg0, %c0_i32, %c0_i32_0 : i32, i32, i32
  }
  func.func @transform_1(%arg0: i32) -> (i32, i32, i32) {
    %c0_i32 = arith.constant 0 : i32
    %c0_i32_0 = arith.constant 0 : i32
    %c0_i32_1 = arith.constant 0 : i32
    return %arg0, %c0_i32, %c0_i32_0 : i32, i32, i32
  }
  func.func @transform_2(%arg0: i32) -> (i32, i32) {
    %c0_i32 = arith.constant 0 : i32
    %c0_i32_0 = arith.constant 0 : i32
    %c0_i32_1 = arith.constant 0 : i32
    return %c0_i32, %c0_i32_0 : i32, i32
  }
  func.func @transform_3(%arg0: i32) -> (i32, i32) {
    %c0_i32 = arith.constant 0 : i32
    %c0_i32_0 = arith.constant 0 : i32
    %c0_i32_1 = arith.constant 0 : i32
    return %c0_i32, %c0_i32_0 : i32, i32
  }
  func.func @transform_4(%arg0: i32) -> (i32, i32) {
    %c0_i32 = arith.constant 0 : i32
    %c0_i32_0 = arith.constant 0 : i32
    %c0_i32_1 = arith.constant 0 : i32
    return %c0_i32, %c0_i32_0 : i32, i32
  }
  func.func @transform_5(%arg0: i32) -> (i32, i32) {
    %c0_i32 = arith.constant 0 : i32
    %c0_i32_0 = arith.constant 0 : i32
    %c0_i32_1 = arith.constant 0 : i32
    return %c0_i32, %c0_i32_0 : i32, i32
  }
  func.func @transform_6(%arg0: i32) -> (i32, i32) {
    %c0_i32 = arith.constant 0 : i32
    %c0_i32_0 = arith.constant 0 : i32
    %c0_i32_1 = arith.constant 0 : i32
    return %c0_i32, %c0_i32_0 : i32, i32
  }
  func.func @transform_7(%arg0: i32) -> (i32, i32) {
    %c0_i32 = arith.constant 0 : i32
    %c0_i32_0 = arith.constant 0 : i32
    %c0_i32_1 = arith.constant 0 : i32
    return %c0_i32, %c0_i32_0 : i32, i32
  }
  func.func @transform_8(%arg0: i32) -> (i32, i32) {
    %c0_i32 = arith.constant 0 : i32
    %c0_i32_0 = arith.constant 0 : i32
    %c0_i32_1 = arith.constant 0 : i32
    return %c0_i32, %c0_i32_0 : i32, i32
  }
  func.func @transform_9(%arg0: i32) -> (i32, i32, i32) {
    %c0_i32 = arith.constant 0 : i32
    %c0_i32_0 = arith.constant 0 : i32
    %c0_i32_1 = arith.constant 0 : i32
    return %arg0, %c0_i32, %c0_i32_0 : i32, i32, i32
  }
}

</mosaic_0001>

<llo_original>
// kernel: tpu_custom_call.1
$region0: #{tpu_custom_call.1}
  #allocation0 [shape = 'u32[]', space=smem, size = 0x4, offset = 0x4, fixed_abs, tag = 'smem constant byte address 0x4 - core index']
  #allocation1 [shape = 'u32[144,128]{1,0:T(1,128)}', space=vmem, size = 0x12000, scoped, tag = 'internal scratch']
  %s0 = inlined_call_operand.hbm [shape: f32[4,16,32], index: 0, kind: input, shape index: {}]
  %s1 = inlined_call_operand.hbm [shape: f32[4,8,32], index: 1, kind: input, shape index: {}]
  %s2 = inlined_call_operand.vmem [shape: f32[1,32], index: 2, kind: input, shape index: {}]
  %s3 = inlined_call_operand.vmem [shape: f32[1,32], index: 3, kind: input, shape index: {}]
  %s4 = inlined_call_operand.vmem [shape: f32[1,32], index: 4, kind: input, shape index: {}]
  %s5 = inlined_call_operand.vmem [shape: f32[1,32], index: 5, kind: input, shape index: {}]
  %s6 = inlined_call_operand.vmem [shape: bf16[32,32], index: 6, kind: input, shape index: {}]
  %s7 = inlined_call_operand.hbm [shape: bf16[32,64], index: 7, kind: input, shape index: {}]
  %s8 = inlined_call_operand.hbm [shape: bf16[32,32], index: 8, kind: input, shape index: {}]
  %s9 = inlined_call_operand.hbm [shape: f32[4,8,32], index: 9, kind: output, shape index: {}]
  %s10 = sld [smem:[#allocation0]]
  $region85: #{tpu_custom_call.1} parent=0
    _
  %s12 = ssub.s32 1, %s10
  %s13 = scalar_select 0, %s12, %s10
  $region1: #{tpu_custom_call.1} parent=0
    #allocation2 [shape = 'u8[32768]{0}', space=vmem, size = 0x8000, scoped, tag = 'input window, operand 0']
    #allocation3 [shape = 's32[2]{0}', space=sflag, size = 0x8, scoped, tag = 'scoped memory for tpu_custom_call.1']
    #allocation4 [shape = 's32[2]{0}', space=sflag, size = 0x8, scoped, tag = 'scoped memory for tpu_custom_call.1']
    #allocation5 [shape = 'u8[16384]{0}', space=vmem, size = 0x4000, scoped, tag = 'input window, operand 1']
    #allocation6 [shape = 's32[2]{0}', space=sflag, size = 0x8, scoped, tag = 'scoped memory for tpu_custom_call.1']
    #allocation7 [shape = 'u8[8192]{0}', space=vmem, size = 0x2000, scoped, tag = 'input window, operand 7, single buffered']
    #allocation8 [shape = 'u8[8192]{0}', space=vmem, size = 0x2000, scoped, tag = 'input window, operand 8, single buffered']
    #allocation9 [shape = 's32[1]{0}', space=sflag, size = 0x4, scoped, tag = 'scoped memory for tpu_custom_call.1']
    #allocation10 [shape = 'u8[16384]{0}', space=vmem, size = 0x4000, scoped, tag = 'output window, operand 0']
    %14 = vsyncpa [#allocation3], 0
    %s15 = scalar_lea.sflag [#allocation3], 1
    %16 = vsyncpa %s15, 0
    %17 = vsyncpa [#allocation6], 0
    %s18 = scalar_lea.sflag [#allocation6], 1
    %19 = vsyncpa %s18, 0
    %20 = vsyncpa [#allocation9], 0
    %21 = vsyncpa [#allocation4], 0
    %s22 = scalar_lea.sflag [#allocation4], 1
    %23 = vsyncpa %s22, 0
    loop: start=0, step=1, limit=4
    $region2: #{tpu_custom_call.1} parent=1 // loop_pre_header
      _
    $region3: #{tpu_custom_call.1} parent=1 // loop_header
      %s25 = sphi 0, %s29
      %p26 = scmp.ge.s32.totalorder %s25, 4
      %s35 = sphi 0, %s37
      %s38 = sphi 0, %s35
      %s39 = sphi 0, %s38
      %s55 = sphi 0, %s39
      %s61 = sphi 0, %s63
      %s64 = sphi 0, %s61
      %s65 = sphi 0, %s64
      %s81 = sphi 0, %s65
      %s85 = sphi 0, %s85
      %s87 = sphi 0, %s85
      %s88 = sphi 0, %s87
      %s102 = sphi 0, %s88
      %s106 = sphi 0, %s106
      %s108 = sphi 0, %s106
      %s109 = sphi 0, %s108
      %s123 = sphi 0, %s109
      %s127 = sphi 0, %s127
      %s129 = sphi 0, %s127
      %s130 = sphi 0, %s129
      %s144 = sphi 0, %s130
      %s148 = sphi 0, %s148
      %s150 = sphi 0, %s148
      %s151 = sphi 0, %s150
      %s165 = sphi 0, %s151
      %s169 = sphi 0, %s169
      %s171 = sphi 0, %s169
      %s172 = sphi 0, %s171
      %s186 = sphi 0, %s172
      %s190 = sphi 0, %s190
      %s192 = sphi 0, %s190
      %s193 = sphi 0, %s192
      %s207 = sphi 0, %s193
      %s211 = sphi 0, %s211
      %s213 = sphi 0, %s211
      %s214 = sphi 0, %s213
      %s228 = sphi 0, %s214
      %s234 = sphi 0, %s236
      %s237 = sphi 0, %s234
      %s238 = sphi 0, %s237
      %s254 = sphi 0, %s238
    $region4: #{tpu_custom_call.1} parent=1 // loop_header_branch
      %28 = sbr.rel (%p26) target = $region8
    $region5: #{tpu_custom_call.1} parent=1 // loop_body
      %s30 = ssub.s32 %s25, 1
      %s31 = ssub.s32 %s25, 2
      %s32 = sadd.s32 %s25, 1
      %s33 = ssub.s32 %s25, %s32
      %p34 = scmp.eq.s32.totalorder %s33, 0
      %s36 = sadd.s32 %s35, 1
      %s37 = scalar_select %p34, %s35, %s36
      %p40 = pneg %p34
      %p41 = scmp.eq.s32.totalorder %s25, 1
      %p42 = por %p40, %p41
      %p43 = scmp.ne.s32.totalorder %s35, %s38
      %p44 = scmp.eq.s32.totalorder %s25, 0
      %p45 = por %p43, %p44
      %p46 = scmp.ne.s32.totalorder %s35, %s38
      %p47 = scmp.eq.s32.totalorder %s30, 1
      %p48 = por %p46, %p47
      %p49 = scmp.ne.s32.totalorder %s38, %s39
      %p50 = scmp.eq.s32.totalorder %s30, 0
      %p51 = por %p49, %p50
      %p52 = scmp.ne.s32.totalorder %s38, %s39
      %p53 = scmp.eq.s32.totalorder %s31, 1
      %p54 = por %p52, %p53
      %p56 = scmp.ne.s32.totalorder %s39, %s55
      %p57 = scmp.eq.s32.totalorder %s31, 0
      %p58 = por %p56, %p57
      %s59 = ssub.s32 %s25, %s32
      %p60 = scmp.eq.s32.totalorder %s59, 0
      %s62 = sadd.s32 %s61, 1
      %s63 = scalar_select %p60, %s61, %s62
      %p66 = pneg %p60
      %p67 = scmp.eq.s32.totalorder %s25, 1
      %p68 = por %p66, %p67
      %p69 = scmp.ne.s32.totalorder %s61, %s64
      %p70 = scmp.eq.s32.totalorder %s25, 0
      %p71 = por %p69, %p70
      %p72 = scmp.ne.s32.totalorder %s61, %s64
      %p73 = scmp.eq.s32.totalorder %s30, 1
      %p74 = por %p72, %p73
      %p75 = scmp.ne.s32.totalorder %s64, %s65
      %p76 = scmp.eq.s32.totalorder %s30, 0
      %p77 = por %p75, %p76
      %p78 = scmp.ne.s32.totalorder %s64, %s65
      %p79 = scmp.eq.s32.totalorder %s31, 1
      %p80 = por %p78, %p79
      %p82 = scmp.ne.s32.totalorder %s65, %s81
      %p83 = scmp.eq.s32.totalorder %s31, 0
      %p84 = por %p82, %p83
      %s86 = sadd.s32 %s85, 1
      %p89 = scmp.eq.s32.totalorder %s25, 1
      %p90 = scmp.ne.s32.totalorder %s85, %s87
      %p91 = scmp.eq.s32.totalorder %s25, 0
      %p92 = por %p90, %p91
      %p93 = scmp.ne.s32.totalorder %s85, %s87
      %p94 = scmp.eq.s32.totalorder %s30, 1
      %p95 = por %p93, %p94
      %p96 = scmp.ne.s32.totalorder %s87, %s88
      %p97 = scmp.eq.s32.totalorder %s30, 0
      %p98 = por %p96, %p97
      %p99 = scmp.ne.s32.totalorder %s87, %s88
      %p100 = scmp.eq.s32.totalorder %s31, 1
      %p101 = por %p99, %p100
      %p103 = scmp.ne.s32.totalorder %s88, %s102
      %p104 = scmp.eq.s32.totalorder %s31, 0
      %p105 = por %p103, %p104
      %s107 = sadd.s32 %s106, 1
      %p110 = scmp.eq.s32.totalorder %s25, 1
      %p111 = scmp.ne.s32.totalorder %s106, %s108
      %p112 = scmp.eq.s32.totalorder %s25, 0
      %p113 = por %p111, %p112
      %p114 = scmp.ne.s32.totalorder %s106, %s108
      %p115 = scmp.eq.s32.totalorder %s30, 1
      %p116 = por %p114, %p115
      %p117 = scmp.ne.s32.totalorder %s108, %s109
      %p118 = scmp.eq.s32.totalorder %s30, 0
      %p119 = por %p117, %p118
      %p120 = scmp.ne.s32.totalorder %s108, %s109
      %p121 = scmp.eq.s32.totalorder %s31, 1
      %p122 = por %p120, %p121
      %p124 = scmp.ne.s32.totalorder %s109, %s123
      %p125 = scmp.eq.s32.totalorder %s31, 0
      %p126 = por %p124, %p125
      %s128 = sadd.s32 %s127, 1
      %p131 = scmp.eq.s32.totalorder %s25, 1
      %p132 = scmp.ne.s32.totalorder %s127, %s129
      %p133 = scmp.eq.s32.totalorder %s25, 0
      %p134 = por %p132, %p133
      %p135 = scmp.ne.s32.totalorder %s127, %s129
      %p136 = scmp.eq.s32.totalorder %s30, 1
      %p137 = por %p135, %p136
      %p138 = scmp.ne.s32.totalorder %s129, %s130
      %p139 = scmp.eq.s32.totalorder %s30, 0
      %p140 = por %p138, %p139
      %p141 = scmp.ne.s32.totalorder %s129, %s130
      %p142 = scmp.eq.s32.totalorder %s31, 1
      %p143 = por %p141, %p142
      %p145 = scmp.ne.s32.totalorder %s130, %s144
      %p146 = scmp.eq.s32.totalorder %s31, 0
      %p147 = por %p145, %p146
      %s149 = sadd.s32 %s148, 1
      %p152 = scmp.eq.s32.totalorder %s25, 1
      %p153 = scmp.ne.s32.totalorder %s148, %s150
      %p154 = scmp.eq.s32.totalorder %s25, 0
      %p155 = por %p153, %p154
      %p156 = scmp.ne.s32.totalorder %s148, %s150
      %p157 = scmp.eq.s32.totalorder %s30, 1
      %p158 = por %p156, %p157
      %p159 = scmp.ne.s32.totalorder %s150, %s151
      %p160 = scmp.eq.s32.totalorder %s30, 0
      %p161 = por %p159, %p160
      %p162 = scmp.ne.s32.totalorder %s150, %s151
      %p163 = scmp.eq.s32.totalorder %s31, 1
      %p164 = por %p162, %p163
      %p166 = scmp.ne.s32.totalorder %s151, %s165
      %p167 = scmp.eq.s32.totalorder %s31, 0
      %p168 = por %p166, %p167
      %s170 = sadd.s32 %s169, 1
      %p173 = scmp.eq.s32.totalorder %s25, 1
      %p174 = scmp.ne.s32.totalorder %s169, %s171
      %p175 = scmp.eq.s32.totalorder %s25, 0
      %p176 = por %p174, %p175
      %p177 = scmp.ne.s32.totalorder %s169, %s171
      %p178 = scmp.eq.s32.totalorder %s30, 1
      %p179 = por %p177, %p178
      %p180 = scmp.ne.s32.totalorder %s171, %s172
      %p181 = scmp.eq.s32.totalorder %s30, 0
      %p182 = por %p180, %p181
      %p183 = scmp.ne.s32.totalorder %s171, %s172
      %p184 = scmp.eq.s32.totalorder %s31, 1
      %p185 = por %p183, %p184
      %p187 = scmp.ne.s32.totalorder %s172, %s186
      %p188 = scmp.eq.s32.totalorder %s31, 0
      %p189 = por %p187, %p188
      %s191 = sadd.s32 %s190, 1
      %p194 = scmp.eq.s32.totalorder %s25, 1
      %p195 = scmp.ne.s32.totalorder %s190, %s192
      %p196 = scmp.eq.s32.totalorder %s25, 0
      %p197 = por %p195, %p196
      %p198 = scmp.ne.s32.totalorder %s190, %s192
      %p199 = scmp.eq.s32.totalorder %s30, 1
      %p200 = por %p198, %p199
      %p201 = scmp.ne.s32.totalorder %s192, %s193
      %p202 = scmp.eq.s32.totalorder %s30, 0
      %p203 = por %p201, %p202
      %p204 = scmp.ne.s32.totalorder %s192, %s193
      %p205 = scmp.eq.s32.totalorder %s31, 1
      %p206 = por %p204, %p205
      %p208 = scmp.ne.s32.totalorder %s193, %s207
      %p209 = scmp.eq.s32.totalorder %s31, 0
      %p210 = por %p208, %p209
      %s212 = sadd.s32 %s211, 1
      %p215 = scmp.eq.s32.totalorder %s25, 1
      %p216 = scmp.ne.s32.totalorder %s211, %s213
      %p217 = scmp.eq.s32.totalorder %s25, 0
      %p218 = por %p216, %p217
      %p219 = scmp.ne.s32.totalorder %s211, %s213
      %p220 = scmp.eq.s32.totalorder %s30, 1
      %p221 = por %p219, %p220
      %p222 = scmp.ne.s32.totalorder %s213, %s214
      %p223 = scmp.eq.s32.totalorder %s30, 0
      %p224 = por %p222, %p223
      %p225 = scmp.ne.s32.totalorder %s213, %s214
      %p226 = scmp.eq.s32.totalorder %s31, 1
      %p227 = por %p225, %p226
      %p229 = scmp.ne.s32.totalorder %s214, %s228
      %p230 = scmp.eq.s32.totalorder %s31, 0
      %p231 = por %p229, %p230
      %s232 = ssub.s32 %s25, %s32
      %p233 = scmp.eq.s32.totalorder %s232, 0
      %s235 = sadd.s32 %s234, 1
      %s236 = scalar_select %p233, %s234, %s235
      %p239 = pneg %p233
      %p240 = scmp.eq.s32.totalorder %s25, 1
      %p241 = por %p239, %p240
      %p242 = scmp.ne.s32.totalorder %s234, %s237
      %p243 = scmp.eq.s32.totalorder %s25, 0
      %p244 = por %p242, %p243
      %p245 = scmp.ne.s32.totalorder %s234, %s237
      %p246 = scmp.eq.s32.totalorder %s30, 1
      %p247 = por %p245, %p246
      %p248 = scmp.ne.s32.totalorder %s237, %s238
      %p249 = scmp.eq.s32.totalorder %s30, 0
      %p250 = por %p248, %p249
      %p251 = scmp.ne.s32.totalorder %s237, %s238
      %p252 = scmp.eq.s32.totalorder %s31, 1
      %p253 = por %p251, %p252
      %p255 = scmp.ne.s32.totalorder %s238, %s254
      %p256 = scmp.eq.s32.totalorder %s31, 0
      %p257 = por %p255, %p256
      %p258 = scmp.le.s32.totalorder 1, %s25
      %p259 = scmp.lt.s32.totalorder %s25, 3
      %p260 = pnand %p258, %p259
      %p261 = pneg %p260
      // Predicated region
      $region9: #{tpu_custom_call.1} parent=5 // pred_check
        _
      $region10: #{tpu_custom_call.1} parent=5 // pred_check_branch
        %263 = sbr.rel (%p260) target = $region12
      $region11: #{tpu_custom_call.1} parent=5 // pred_region
        %s264 = ssub.s32 %s25, 1
        // Predicated region
        $region13: #{tpu_custom_call.1} parent=11 // pred_check
          %p265 = pneg %p98
        $region14: #{tpu_custom_call.1} parent=11 // pred_check_branch
          %267 = sbr.rel (%p265) target = $region16
        $region15: #{tpu_custom_call.1} parent=11 // pred_region
          _
        $region16: #{tpu_custom_call.1} parent=11 // pred_fallthru
          _
        // Predicated region
        $region17: #{tpu_custom_call.1} parent=11 // pred_check
          %p268 = pneg %p119
        $region18: #{tpu_custom_call.1} parent=11 // pred_check_branch
          %270 = sbr.rel (%p268) target = $region20
        $region19: #{tpu_custom_call.1} parent=11 // pred_region
          _
        $region20: #{tpu_custom_call.1} parent=11 // pred_fallthru
          _
        // Predicated region
        $region21: #{tpu_custom_call.1} parent=11 // pred_check
          %p271 = pneg %p140
        $region22: #{tpu_custom_call.1} parent=11 // pred_check_branch
          %273 = sbr.rel (%p271) target = $region24
        $region23: #{tpu_custom_call.1} parent=11 // pred_region
          _
        $region24: #{tpu_custom_call.1} parent=11 // pred_fallthru
          _
        // Predicated region
        $region25: #{tpu_custom_call.1} parent=11 // pred_check
          %p274 = pneg %p161
        $region26: #{tpu_custom_call.1} parent=11 // pred_check_branch
          %276 = sbr.rel (%p274) target = $region28
        $region27: #{tpu_custom_call.1} parent=11 // pred_region
          _
        $region28: #{tpu_custom_call.1} parent=11 // pred_fallthru
          _
        // Predicated region
        $region29: #{tpu_custom_call.1} parent=11 // pred_check
          %p277 = pneg %p182
        $region30: #{tpu_custom_call.1} parent=11 // pred_check_branch
          %279 = sbr.rel (%p277) target = $region32
        $region31: #{tpu_custom_call.1} parent=11 // pred_region
          _
        $region32: #{tpu_custom_call.1} parent=11 // pred_fallthru
          _
        // Predicated region
        $region33: #{tpu_custom_call.1} parent=11 // pred_check
          %p280 = pneg %p203
        $region34: #{tpu_custom_call.1} parent=11 // pred_check_branch
          %282 = sbr.rel (%p280) target = $region36
        $region35: #{tpu_custom_call.1} parent=11 // pred_region
          %s284 = ssub.s32 256, 256
          %285 = vsyncadd [#allocation6], %s284
          %s286 = sshll.u32 [#allocation7], 4
          %s287 = int_to_ptr.vmem [resolvable:$true] %s286
          %292 = dma.hbm_to_vmem [thread:$0]  %s7, 256, %s287, [#allocation6], 64, 64, 4
        $region36: #{tpu_custom_call.1} parent=11 // pred_fallthru
          _
        // Predicated region
        $region37: #{tpu_custom_call.1} parent=11 // pred_check
          %p293 = pneg %p224
        $region38: #{tpu_custom_call.1} parent=11 // pred_check_branch
          %295 = sbr.rel (%p293) target = $region40
        $region39: #{tpu_custom_call.1} parent=11 // pred_region
          %s297 = ssub.s32 256, 256
          %298 = vsyncadd [#allocation9], %s297
          %s299 = sshll.u32 [#allocation8], 4
          %s300 = int_to_ptr.vmem [resolvable:$true] %s299
          %305 = dma.hbm_to_vmem [thread:$0]  %s8, 256, %s300, [#allocation9], 64, 64, 4
        $region40: #{tpu_custom_call.1} parent=11 // pred_fallthru
          _
      $region12: #{tpu_custom_call.1} parent=5 // pred_fallthru
        _
      %p306 = scmp.lt.s32.totalorder %s25, 2
      // Predicated region
      $region41: #{tpu_custom_call.1} parent=5 // pred_check
        %p307 = pneg %p306
      $region42: #{tpu_custom_call.1} parent=5 // pred_check_branch
        %309 = sbr.rel (%p307) target = $region44
      $region43: #{tpu_custom_call.1} parent=5 // pred_region
        // Predicated region
        $region45: #{tpu_custom_call.1} parent=43 // pred_check
          %p310 = pneg %p45
        $region46: #{tpu_custom_call.1} parent=43 // pred_check_branch
          %312 = sbr.rel (%p310) target = $region48
        $region47: #{tpu_custom_call.1} parent=43 // pred_region
          %s313 = sand.u32 %s35, 1
          %s314 = scalar_lea.sflag [#allocation3], %s313
          %s315 = sand.u32 %s35, 1
          %s316 = smul.addr %s315, 32
          %s317 = scalar_lea.vmem [#allocation2], %s316
          %s318 = smul.u32 2, %s25
          %s320 = ssub.s32 512, 512
          %321 = vsyncadd %s314, %s320
          %s322 = smul.addr %s318, 2
          %s323 = smul.addr %s322, 128
          %s324 = scalar_lea.hbm %s0, %s323
          %s325 = sshll.u32 %s317, 4
          %s326 = int_to_ptr.vmem [resolvable:$true] %s325
          %331 = dma.hbm_to_vmem [thread:$0]  %s324, 512, %s326, %s314, 128, 128, 8
        $region48: #{tpu_custom_call.1} parent=43 // pred_fallthru
          _
        // Predicated region
        $region49: #{tpu_custom_call.1} parent=43 // pred_check
          %p332 = pneg %p71
        $region50: #{tpu_custom_call.1} parent=43 // pred_check_branch
          %334 = sbr.rel (%p332) target = $region52
        $region51: #{tpu_custom_call.1} parent=43 // pred_region
          %s335 = sand.u32 %s25, 1
          %s336 = scalar_lea.sflag [#allocation6], %s335
          %s337 = sand.u32 %s61, 1
          %s338 = smul.addr %s337, 16
          %s339 = scalar_lea.vmem [#allocation5], %s338
          %s340 = smul.u32 2, %s25
          %s342 = ssub.s32 256, 256
          %343 = vsyncadd %s336, %s342
          %s344 = smul.addr %s340, 128
          %s345 = scalar_lea.hbm %s1, %s344
          %s346 = sshll.u32 %s339, 4
          %s347 = int_to_ptr.vmem [resolvable:$true] %s346
          %352 = dma.hbm_to_vmem [thread:$0]  %s345, 256, %s347, %s336, 128, 128, 8
        $region52: #{tpu_custom_call.1} parent=43 // pred_fallthru
          _
      $region44: #{tpu_custom_call.1} parent=5 // pred_fallthru
        _
      %p353 = scmp.le.s32.totalorder 1, %s25
      %p354 = scmp.lt.s32.totalorder %s25, 3
      %p355 = pnand %p353, %p354
      %p356 = pneg %p355
      // Predicated region
      $region53: #{tpu_custom_call.1} parent=5 // pred_check
        _
      $region54: #{tpu_custom_call.1} parent=5 // pred_check_branch
        %358 = sbr.rel (%p355) target = $region56
      $region55: #{tpu_custom_call.1} parent=5 // pred_region
        %s359 = ssub.s32 %s25, 1
        %s360 = sand.u32 %s38, 1
        %s361 = scalar_lea.sflag [#allocation3], %s360
        %s362 = sand.u32 %s38, 1
        %s363 = smul.addr %s362, 32
        %s364 = scalar_lea.vmem [#allocation2], %s363
        // Predicated region
        $region57: #{tpu_custom_call.1} parent=55 // pred_check
          %p365 = pneg %p51
        $region58: #{tpu_custom_call.1} parent=55 // pred_check_branch
          %367 = sbr.rel (%p365) target = $region60
        $region59: #{tpu_custom_call.1} parent=55 // pred_region
          %368 = dma.done %s361, 512
        $region60: #{tpu_custom_call.1} parent=55 // pred_fallthru
          _
        %s369 = sand.u32 %s30, 1
        %s370 = scalar_lea.sflag [#allocation6], %s369
        %s371 = sand.u32 %s64, 1
        %s372 = smul.addr %s371, 16
        %s373 = scalar_lea.vmem [#allocation5], %s372
        // Predicated region
        $region61: #{tpu_custom_call.1} parent=55 // pred_check
          %p374 = pneg %p77
        $region62: #{tpu_custom_call.1} parent=55 // pred_check_branch
          %376 = sbr.rel (%p374) target = $region64
        $region63: #{tpu_custom_call.1} parent=55 // pred_region
          %377 = dma.done %s370, 256
        $region64: #{tpu_custom_call.1} parent=55 // pred_fallthru
          _
        // Predicated region
        $region65: #{tpu_custom_call.1} parent=55 // pred_check
          %p378 = pneg %p203
        $region66: #{tpu_custom_call.1} parent=55 // pred_check_branch
          %380 = sbr.rel (%p378) target = $region68
        $region67: #{tpu_custom_call.1} parent=55 // pred_region
          %381 = dma.done [#allocation6], 256
        $region68: #{tpu_custom_call.1} parent=55 // pred_fallthru
          _
        // Predicated region
        $region69: #{tpu_custom_call.1} parent=55 // pred_check
          %p382 = pneg %p224
        $region70: #{tpu_custom_call.1} parent=55 // pred_check_branch
          %384 = sbr.rel (%p382) target = $region72
        $region71: #{tpu_custom_call.1} parent=55 // pred_region
          %385 = dma.done [#allocation9], 256
        $region72: #{tpu_custom_call.1} parent=55 // pred_fallthru
          _
        %s386 = sand.u32 %s38, 1
        %s387 = scalar_lea.sflag [#allocation3], %s386
        %s388 = sand.u32 %s38, 1
        %s389 = smul.addr %s388, 32
        %s390 = scalar_lea.vmem [#allocation2], %s389
        %p391 = pneg %p51
        %p392 = pneg %p48
        %s393 = sand.u32 %s30, 1
        %s394 = scalar_lea.sflag [#allocation6], %s393
        %s395 = sand.u32 %s64, 1
        %s396 = smul.addr %s395, 16
        %s397 = scalar_lea.vmem [#allocation5], %s396
        %p398 = pneg %p77
        %p399 = pneg %p74
        %p400 = pneg %p98
        %p401 = pneg %p95
        %p402 = pneg %p119
        %p403 = pneg %p116
        %p404 = pneg %p140
        %p405 = pneg %p137
        %p406 = pneg %p161
        %p407 = pneg %p158
        %p408 = pneg %p182
        %p409 = pneg %p179
        %p410 = pneg %p203
        %p411 = pneg %p200
        %p412 = pneg %p224
        %p413 = pneg %p221
        %p414 = pneg %p250
        %p415 = pneg %p247
        %s416 = sand.u32 %s237, 1
        %s417 = scalar_lea.sflag [#allocation4], %s416
        %s418 = sand.u32 %s237, 1
        %s419 = smul.addr %s418, 16
        %s420 = scalar_lea.vmem [#allocation10], %s419
        %s421 = smul.u32 2, %s30
        %s422 = smul.u32 2, %s30
        %s423 = smul.u32 2, %s30
        %v425 = vld [vmem:[%s364] sm:$0xff]
        %v426 = vld [vmem:[%s364 + $0x8] sm:$0xff]
        %v427 = vld [vmem:[%s364 + $0x10] sm:$0xff]
        %v428 = vld [vmem:[%s364 + $0x18] sm:$0xff]
        %v429 = vld [vmem:[%s2] sm:$0x1]
        %v430 = vld [vmem:[%s3] sm:$0x1]
        %vm431 = vcmask 261120
        %v432 = vsel %vm431, %v425, 0.0
        %433 = vadd.xlane.f32.xlu0 %v432
        %v434 = vpop.xlane.xlu0 %433
        %v435 = vsel %vm431, %v426, 0.0
        %436 = vadd.xlane.f32.xlu0 %v435
        %v437 = vpop.xlane.xlu0 %436
        %v438 = vsel %vm431, %v427, 0.0
        %439 = vadd.xlane.f32.xlu0 %v438
        %v440 = vpop.xlane.xlu0 %439
        %v441 = vsel %vm431, %v428, 0.0
        %442 = vadd.xlane.f32.xlu0 %v441
        %v443 = vpop.xlane.xlu0 %442
        %v444 = vrcp.pop 32.0
        %v445 = vmul.f32 %v434, %v444
        %v446 = vmul.f32 %v437, %v444
        %v447 = vmul.f32 %v440, %v444
        %v448 = vmul.f32 %v443, %v444
        %v449 = vsub.f32 %v425, %v445
        %v450 = vsub.f32 %v426, %v446
        %v451 = vsub.f32 %v427, %v447
        %v452 = vsub.f32 %v428, %v448
        %v453 = vmul.f32 %v449, %v449
        %v454 = vmul.f32 %v450, %v450
        %v455 = vmul.f32 %v451, %v451
        %v456 = vmul.f32 %v452, %v452
        %v457 = vsel %vm431, %v453, 0.0
        %458 = vadd.xlane.f32.xlu0 %v457
        %v459 = vpop.xlane.xlu0 %458
        %v460 = vsel %vm431, %v454, 0.0
        %461 = vadd.xlane.f32.xlu0 %v460
        %v462 = vpop.xlane.xlu0 %461
        %v463 = vsel %vm431, %v455, 0.0
        %464 = vadd.xlane.f32.xlu0 %v463
        %v465 = vpop.xlane.xlu0 %464
        %v466 = vsel %vm431, %v456, 0.0
        %467 = vadd.xlane.f32.xlu0 %v466
        %v468 = vpop.xlane.xlu0 %467
        %v469 = vmul.f32 %v459, %v444
        %v470 = vmul.f32 %v462, %v444
        %v471 = vmul.f32 %v465, %v444
        %v472 = vmul.f32 %v468, %v444
        %v473 = vadd.f32 %v469, 1e-05
        %v474 = vadd.f32 %v470, 1e-05
        %v475 = vadd.f32 %v471, 1e-05
        %v476 = vadd.f32 %v472, 1e-05
        %v477 = vrsqrt.pop %v473
        %v478 = vrsqrt.pop %v474
        %v479 = vrsqrt.pop %v475
        %v480 = vrsqrt.pop %v476
        %v481 = vmul.f32 %v449, %v477
        %v482 = vmul.f32 %v450, %v478
        %v483 = vmul.f32 %v451, %v479
        %v484 = vmul.f32 %v452, %v480
        %v486 = vlaneseq
        %v487 = vshrl.u32 %v486, 7
        %v488 = vsub.s32 0, %v487
        %v489 = vrot.slane %v429, %v488
        %v491 = vmul.f32 %v481, %v489
        %v492 = vmul.f32 %v482, %v489
        %v493 = vmul.f32 %v483, %v489
        %v494 = vmul.f32 %v484, %v489
        %v496 = vlaneseq
        %v497 = vshrl.u32 %v496, 7
        %v498 = vsub.s32 0, %v497
        %v499 = vrot.slane %v430, %v498
        %v501 = vadd.f32 %v491, %v499
        %v502 = vadd.f32 %v492, %v499
        %v503 = vadd.f32 %v493, %v499
        %v504 = vadd.f32 %v494, %v499
        %v505 = vld [vmem:[%s373] sm:$0xff]
        %v506 = vld [vmem:[%s373 + $0x8] sm:$0xff]
        %v507 = vld [vmem:[%s4] sm:$0x1]
        %v508 = vld [vmem:[%s5] sm:$0x1]
        %v509 = vsel %vm431, %v505, 0.0
        %510 = vadd.xlane.f32.xlu0 %v509
        %v511 = vpop.xlane.xlu0 %510
        %v512 = vsel %vm431, %v506, 0.0
        %513 = vadd.xlane.f32.xlu0 %v512
        %v514 = vpop.xlane.xlu0 %513
        %v515 = vmul.f32 %v511, %v444
        %v516 = vmul.f32 %v514, %v444
        %v517 = vsub.f32 %v505, %v515
        %v518 = vsub.f32 %v506, %v516
        %v519 = vmul.f32 %v517, %v517
        %v520 = vmul.f32 %v518, %v518
        %v521 = vsel %vm431, %v519, 0.0
        %522 = vadd.xlane.f32.xlu0 %v521
        %v523 = vpop.xlane.xlu0 %522
        %v524 = vsel %vm431, %v520, 0.0
        %525 = vadd.xlane.f32.xlu0 %v524
        %v526 = vpop.xlane.xlu0 %525
        %v527 = vmul.f32 %v523, %v444
        %v528 = vmul.f32 %v526, %v444
        %v529 = vadd.f32 %v527, 1e-05
        %v530 = vadd.f32 %v528, 1e-05
        %v531 = vrsqrt.pop %v529
        %v532 = vrsqrt.pop %v530
        %v533 = vmul.f32 %v517, %v531
        %v534 = vmul.f32 %v518, %v532
        %v536 = vlaneseq
        %v537 = vshrl.u32 %v536, 7
        %v538 = vsub.s32 0, %v537
        %v539 = vrot.slane %v507, %v538
        %v541 = vmul.f32 %v533, %v539
        %v542 = vmul.f32 %v534, %v539
        %v544 = vlaneseq
        %v545 = vshrl.u32 %v544, 7
        %v546 = vsub.s32 0, %v545
        %v547 = vrot.slane %v508, %v546
        %v549 = vadd.f32 %v541, %v547
        %v550 = vadd.f32 %v542, %v547
        %v551 = vpack.c.bf16 %v502, %v501
        %v552 = vpack.c.bf16 %v503, %v549
        %v553 = vpack.c.bf16 %v550, %v504
        %v554 = vpack.c.bf16 %v550, %v549
        %v555 = vld [vmem:[%s6] sm:$0xf]
        %v556 = vld [vmem:[%s6 + $0x4] sm:$0xf]
        %v557 = vld [vmem:[%s6 + $0x8] sm:$0xf]
        %v558 = vld [vmem:[%s6 + $0xc] sm:$0xf]
        %v563 = vunpack.c.l.b16 %v555
        %v564 = vunpack.c.l.b16 %v556
        %v565 = vunpack.c.l.b16 %v557
        %v566 = vunpack.c.l.b16 %v558
        %v567 = vpack.c.b16 %v564, %v563
        %v568 = vpack.c.b16 %v566, %v565
        %v572 = vsel %vm431, %v554, 0
        %574 = vmatprep.subr.bf16.mxu0 0
        %575 = vmatpush1.bf16.msra.mxu0 %v567
        %576 = vmatprep.subr.bf16.mxu0 0
        %577 = vmatpush1.bf16.msra.mxu0 %v568
        %578 = vmatprep.subr.bf16.mxu0 0
        %579 = vmatpush1.bf16.msra.mxu0 0
        %580 = vmatprep.subr.bf16.mxu0 0
        %581 = vmatpush1.bf16.msra.mxu0 0
        %582 = vmatprep.subr.bf16.mxu0 0
        %583 = vmatpush1.bf16.msra.mxu0 0
        %584 = vmatprep.subr.bf16.mxu0 0
        %585 = vmatpush1.bf16.msra.mxu0 0
        %586 = vmatprep.subr.bf16.mxu0 0
        %587 = vmatpush1.bf16.msra.mxu0 0
        %588 = vmatprep.subr.bf16.mxu0 0
        %589 = vmatpush1.bf16.msra.mxu0 0
        %590 = vmatprep.subr.bf16.mxu0 0
        %591 = vmatpush1.bf16.msra.mxu0 0
        %592 = vmatprep.subr.bf16.mxu0 0
        %593 = vmatpush1.bf16.msra.mxu0 0
        %594 = vmatprep.subr.bf16.mxu0 0
        %595 = vmatpush1.bf16.msra.mxu0 0
        %596 = vmatprep.subr.bf16.mxu0 0
        %597 = vmatpush1.bf16.msra.mxu0 0
        %598 = vmatprep.subr.bf16.mxu0 0
        %599 = vmatpush1.bf16.msra.mxu0 0
        %600 = vmatprep.subr.bf16.mxu0 0
        %601 = vmatpush1.bf16.msra.mxu0 0
        %602 = vmatprep.subr.bf16.mxu0 0
        %603 = vmatpush1.bf16.msra.mxu0 0
        %604 = vmatprep.subr.bf16.mxu0 0
        %605 = vmatpush1.bf16.msra.mxu0 0
        %606 = vmatprep.mubr.bf16.mxu0 0
        %607 = vmatmul.mubr.bf16.gmra.mrb[0].mxu0 %v572
        %v608 = vpop.f32.mrb[0].mxu0
        %v609 = vadd.f32 0.0, %v608
        %v610 = vpop.f32.mrb[0].mxu0
        %v611 = vpop.f32.mrb[0].mxu0
        %v612 = vadd.f32 0.0, %v611
        %v613 = vpop.f32.mrb[0].mxu0
        %614 = vdwg.mxu0
        %v615 = vld [vmem:[#allocation7] sm:$0xf]
        %v616 = vld [vmem:[#allocation7 + $0x4] sm:$0xf]
        %v617 = vld [vmem:[#allocation7 + $0x8] sm:$0xf]
        %v618 = vld [vmem:[#allocation7 + $0xc] sm:$0xf]
        %v623 = vunpack.c.l.b16 %v615
        %v624 = vunpack.c.l.b16 %v616
        %v625 = vunpack.c.l.b16 %v617
        %v626 = vunpack.c.l.b16 %v618
        %v627 = vpack.c.b16 %v624, %v623
        %v628 = vpack.c.b16 %v626, %v625
        %v632 = vsel %vm431, %v551, 0
        %v635 = vsel %vm431, %v552, 0
        %v638 = vsel %vm431, %v553, 0
        %640 = vmatprep.subr.bf16.mxu0 0
        %641 = vmatpush1.bf16.msra.mxu0 %v627
        %642 = vmatprep.subr.bf16.mxu0 0
        %643 = vmatpush1.bf16.msra.mxu0 %v628
        %644 = vmatprep.subr.bf16.mxu0 0
        %645 = vmatpush1.bf16.msra.mxu0 0
        %646 = vmatprep.subr.bf16.mxu0 0
        %647 = vmatpush1.bf16.msra.mxu0 0
        %648 = vmatprep.subr.bf16.mxu0 0
        %649 = vmatpush1.bf16.msra.mxu0 0
        %650 = vmatprep.subr.bf16.mxu0 0
        %651 = vmatpush1.bf16.msra.mxu0 0
        %652 = vmatprep.subr.bf16.mxu0 0
        %653 = vmatpush1.bf16.msra.mxu0 0
        %654 = vmatprep.subr.bf16.mxu0 0
        %655 = vmatpush1.bf16.msra.mxu0 0
        %656 = vmatprep.subr.bf16.mxu0 0
        %657 = vmatpush1.bf16.msra.mxu0 0
        %658 = vmatprep.subr.bf16.mxu0 0
        %659 = vmatpush1.bf16.msra.mxu0 0
        %660 = vmatprep.subr.bf16.mxu0 0
        %661 = vmatpush1.bf16.msra.mxu0 0
        %662 = vmatprep.subr.bf16.mxu0 0
        %663 = vmatpush1.bf16.msra.mxu0 0
        %664 = vmatprep.subr.bf16.mxu0 0
        %665 = vmatpush1.bf16.msra.mxu0 0
        %666 = vmatprep.subr.bf16.mxu0 0
        %667 = vmatpush1.bf16.msra.mxu0 0
        %668 = vmatprep.subr.bf16.mxu0 0
        %669 = vmatpush1.bf16.msra.mxu0 0
        %670 = vmatprep.subr.bf16.mxu0 0
        %671 = vmatpush1.bf16.msra.mxu0 0
        %672 = vmatprep.mubr.bf16.mxu0 0
        %673 = vmatmul.mubr.bf16.gmra.mrb[0].mxu0 %v632
        %v674 = vpop.f32.mrb[0].mxu0
        %v675 = vadd.f32 0.0, %v674
        %v676 = vpop.f32.mrb[0].mxu0
        %v677 = vpop.f32.mrb[0].mxu0
        %v678 = vadd.f32 0.0, %v677
        %v679 = vpop.f32.mrb[0].mxu0
        %680 = vmatprep.mubr.bf16.mxu0 0
        %681 = vmatmul.mubr.bf16.gmra.mrb[0].mxu0 %v635
        %v682 = vpop.f32.mrb[0].mxu0
        %v683 = vadd.f32 0.0, %v682
        %v684 = vpop.f32.mrb[0].mxu0
        %v685 = vpop.f32.mrb[0].mxu0
        %v686 = vadd.f32 0.0, %v685
        %v687 = vpop.f32.mrb[0].mxu0
        %688 = vmatprep.mubr.bf16.mxu0 0
        %689 = vmatmul.mubr.bf16.gmra.mrb[0].mxu0 %v638
        %v690 = vpop.f32.mrb[0].mxu0
        %v691 = vadd.f32 0.0, %v690
        %v692 = vpop.f32.mrb[0].mxu0
        %v693 = vpop.f32.mrb[0].mxu0
        %v694 = vadd.f32 0.0, %v693
        %v695 = vpop.f32.mrb[0].mxu0
        %696 = vdwg.mxu0
        %v697 = vpack.c.bf16 %v612, %v609
        %v698 = vpack.c.bf16 %v678, %v675
        %v699 = vpack.c.bf16 %v686, %v683
        %v700 = vpack.c.bf16 %v694, %v691
        %v701 = vld [vmem:[#allocation8] sm:$0xf]
        %v702 = vld [vmem:[#allocation8 + $0x4] sm:$0xf]
        %v703 = vld [vmem:[#allocation8 + $0x8] sm:$0xf]
        %v704 = vld [vmem:[#allocation8 + $0xc] sm:$0xf]
        %v706 = vunpack.c.l.b16 %v697
        %v707 = vunpack.c.h.b16 %v697
        %v708 = vpack.c.b16 %v706, %v706
        %v709 = vpack.c.b16 %v707, %v707
        %v713 = vunpack.c.l.b16 %v698
        %v714 = vunpack.c.h.b16 %v698
        %v715 = vunpack.c.l.b16 %v699
        %v716 = vunpack.c.h.b16 %v699
        %v717 = vunpack.c.l.b16 %v700
        %v718 = vunpack.c.h.b16 %v700
        %v719 = vpack.c.b16 %v714, %v713
        %v720 = vpack.c.b16 %v715, %v715
        %vm721 = vcmask 64512
        %v723 = vsel %vm721, %v708, 0
        %v726 = vsel %vm721, %v719, 0
        %v729 = vsel %vm721, %v720, 0
        %731 = vmatprep.subr.bf16.mxu0 0
        %732 = vmatpush1.bf16.xpose.msra.mxu0 %v726
        %733 = vmatprep.subr.bf16.mxu0 0
        %734 = vmatpush1.bf16.xpose.msra.mxu0 %v729
        %735 = vmatprep.subr.bf16.mxu0 0
        %736 = vmatpush1.bf16.xpose.msra.mxu0 0
        %737 = vmatprep.subr.bf16.mxu0 0
        %738 = vmatpush1.bf16.xpose.msra.mxu0 0
        %739 = vmatprep.subr.bf16.mxu0 0
        %740 = vmatpush1.bf16.xpose.msra.mxu0 0
        %741 = vmatprep.subr.bf16.mxu0 0
        %742 = vmatpush1.bf16.xpose.msra.mxu0 0
        %743 = vmatprep.subr.bf16.mxu0 0
        %744 = vmatpush1.bf16.xpose.msra.mxu0 0
        %745 = vmatprep.subr.bf16.mxu0 0
        %746 = vmatpush1.bf16.xpose.msra.mxu0 0
        %747 = vmatprep.subr.bf16.mxu0 0
        %748 = vmatpush1.bf16.xpose.msra.mxu0 0
        %749 = vmatprep.subr.bf16.mxu0 0
        %750 = vmatpush1.bf16.xpose.msra.mxu0 0
        %751 = vmatprep.subr.bf16.mxu0 0
        %752 = vmatpush1.bf16.xpose.msra.mxu0 0
        %753 = vmatprep.subr.bf16.mxu0 0
        %754 = vmatpush1.bf16.xpose.msra.mxu0 0
        %755 = vmatprep.subr.bf16.mxu0 0
        %756 = vmatpush1.bf16.xpose.msra.mxu0 0
        %757 = vmatprep.subr.bf16.mxu0 0
        %758 = vmatpush1.bf16.xpose.msra.mxu0 0
        %759 = vmatprep.subr.bf16.mxu0 0
        %760 = vmatpush1.bf16.xpose.msra.mxu0 0
        %761 = vmatprep.subr.bf16.mxu0 0
        %762 = vmatpush1.bf16.xpose.msra.mxu0 0
        %763 = vmatprep.mubr.bf16.mxu0 0
        %764 = vmatmul.mubr.bf16.gmra.mrb[0].mxu0 %v723
        %v765 = vpop.f32.mrb[0].mxu0
        %v766 = vadd.f32 0.0, %v765
        %v767 = vpop.f32.mrb[0].mxu0
        %v768 = vpop.f32.mrb[0].mxu0
        %v769 = vpop.f32.mrb[0].mxu0
        %770 = vdwg.mxu0
        %v771 = vpack.c.b16 %v717, %v716
        %v772 = vpack.c.b16 %v718, %v718
        %v774 = vsel %vm721, %v709, 0
        %v777 = vsel %vm721, %v771, 0
        %v780 = vsel %vm721, %v772, 0
        %782 = vmatprep.subr.bf16.mxu0 0
        %783 = vmatpush1.bf16.xpose.msra.mxu0 %v777
        %784 = vmatprep.subr.bf16.mxu0 0
        %785 = vmatpush1.bf16.xpose.msra.mxu0 %v780
        %786 = vmatprep.subr.bf16.mxu0 0
        %787 = vmatpush1.bf16.xpose.msra.mxu0 0
        %788 = vmatprep.subr.bf16.mxu0 0
        %789 = vmatpush1.bf16.xpose.msra.mxu0 0
        %790 = vmatprep.subr.bf16.mxu0 0
        %791 = vmatpush1.bf16.xpose.msra.mxu0 0
        %792 = vmatprep.subr.bf16.mxu0 0
        %793 = vmatpush1.bf16.xpose.msra.mxu0 0
        %794 = vmatprep.subr.bf16.mxu0 0
        %795 = vmatpush1.bf16.xpose.msra.mxu0 0
        %796 = vmatprep.subr.bf16.mxu0 0
        %797 = vmatpush1.bf16.xpose.msra.mxu0 0
        %798 = vmatprep.subr.bf16.mxu0 0
        %799 = vmatpush1.bf16.xpose.msra.mxu0 0
        %800 = vmatprep.subr.bf16.mxu0 0
        %801 = vmatpush1.bf16.xpose.msra.mxu0 0
        %802 = vmatprep.subr.bf16.mxu0 0
        %803 = vmatpush1.bf16.xpose.msra.mxu0 0
        %804 = vmatprep.subr.bf16.mxu0 0
        %805 = vmatpush1.bf16.xpose.msra.mxu0 0
        %806 = vmatprep.subr.bf16.mxu0 0
        %807 = vmatpush1.bf16.xpose.msra.mxu0 0
        %808 = vmatprep.subr.bf16.mxu0 0
        %809 = vmatpush1.bf16.xpose.msra.mxu0 0
        %810 = vmatprep.subr.bf16.mxu0 0
        %811 = vmatpush1.bf16.xpose.msra.mxu0 0
        %812 = vmatprep.subr.bf16.mxu0 0
        %813 = vmatpush1.bf16.xpose.msra.mxu0 0
        %814 = vmatprep.mubr.bf16.mxu0 0
        %815 = vmatmul.mubr.bf16.gmra.mrb[0].mxu0 %v774
        %v816 = vpop.f32.mrb[0].mxu0
        %v817 = vadd.f32 0.0, %v816
        %v818 = vpop.f32.mrb[0].mxu0
        %v819 = vpop.f32.mrb[0].mxu0
        %v820 = vpop.f32.mrb[0].mxu0
        %821 = vdwg.mxu0
        %vm822 = vcmask 195584
        %v823 = vsel %vm822, %v766, -inf
        %824 = vmax.xlane.f32.xlu0 %v823
        %v825 = vpop.xlane.xlu0 %824
        %v826 = vsel %vm822, %v817, -inf
        %827 = vmax.xlane.f32.xlu0 %v826
        %v828 = vpop.xlane.xlu0 %827
        %v829 = vsub.f32 %v766, %v825
        %v830 = vsub.f32 %v817, %v828
        %v831 = vmul.f32 %v829, 1.442695
        %v832 = vpow.pop %v831
        %v833 = vmul.f32 %v830, 1.442695
        %v834 = vpow.pop %v833
        %v835 = vsel %vm822, %v832, 0.0
        %836 = vadd.xlane.f32.xlu0 %v835
        %v837 = vpop.xlane.xlu0 %836
        %v838 = vsel %vm822, %v834, 0.0
        %839 = vadd.xlane.f32.xlu0 %v838
        %v840 = vpop.xlane.xlu0 %839
        %v841 = vrcp.pop %v837
        %v842 = vrcp.pop %v840
        %v843 = vpack.c.bf16 %v832, %v832
        %v844 = vpack.c.bf16 %v834, %v834
        %845 = vrot.lane.b32.xlu0 %v719, 96
        %v846 = vpop.permute.xlu0 %845
        %847 = vrot.lane.b32.xlu0 %v720, 96
        %v848 = vpop.permute.xlu0 %847
        %v851 = vsel %vm822, %v843, 0
        %vm853 = vcmask 1043456
        %v855 = vsel %vm853, %v848, 0
        %857 = vmatprep.subr.bf16.mxu0 0
        %858 = vmatpush1.bf16.msra.mxu0 %v846
        %859 = vmatprep.subr.bf16.mxu0 0
        %860 = vmatpush1.bf16.msra.mxu0 %v855
        %861 = vmatprep.subr.bf16.mxu0 0
        %862 = vmatpush1.bf16.msra.mxu0 0
        %863 = vmatprep.subr.bf16.mxu0 0
        %864 = vmatpush1.bf16.msra.mxu0 0
        %865 = vmatprep.subr.bf16.mxu0 0
        %866 = vmatpush1.bf16.msra.mxu0 0
        %867 = vmatprep.subr.bf16.mxu0 0
        %868 = vmatpush1.bf16.msra.mxu0 0
        %869 = vmatprep.subr.bf16.mxu0 0
        %870 = vmatpush1.bf16.msra.mxu0 0
        %871 = vmatprep.subr.bf16.mxu0 0
        %872 = vmatpush1.bf16.msra.mxu0 0
        %873 = vmatprep.subr.bf16.mxu0 0
        %874 = vmatpush1.bf16.msra.mxu0 0
        %875 = vmatprep.subr.bf16.mxu0 0
        %876 = vmatpush1.bf16.msra.mxu0 0
        %877 = vmatprep.subr.bf16.mxu0 0
        %878 = vmatpush1.bf16.msra.mxu0 0
        %879 = vmatprep.subr.bf16.mxu0 0
        %880 = vmatpush1.bf16.msra.mxu0 0
        %881 = vmatprep.subr.bf16.mxu0 0
        %882 = vmatpush1.bf16.msra.mxu0 0
        %883 = vmatprep.subr.bf16.mxu0 0
        %884 = vmatpush1.bf16.msra.mxu0 0
        %885 = vmatprep.subr.bf16.mxu0 0
        %886 = vmatpush1.bf16.msra.mxu0 0
        %887 = vmatprep.subr.bf16.mxu0 0
        %888 = vmatpush1.bf16.msra.mxu0 0
        %889 = vmatprep.mubr.bf16.mxu0 0
        %890 = vmatmul.mubr.bf16.gmra.mrb[0].mxu0 %v851
        %v891 = vpop.f32.mrb[0].mxu0
        %v892 = vadd.f32 0.0, %v891
        %v893 = vpop.f32.mrb[0].mxu0
        %v894 = vpop.f32.mrb[0].mxu0
        %v895 = vpop.f32.mrb[0].mxu0
        %896 = vdwg.mxu0
        %897 = vrot.lane.b32.xlu0 %v771, 96
        %v898 = vpop.permute.xlu0 %897
        %899 = vrot.lane.b32.xlu0 %v772, 96
        %v900 = vpop.permute.xlu0 %899
        %v903 = vsel %vm822, %v844, 0
        %v906 = vsel %vm853, %v900, 0
        %908 = vmatprep.subr.bf16.mxu0 0
        %909 = vmatpush1.bf16.msra.mxu0 %v898
        %910 = vmatprep.subr.bf16.mxu0 0
        %911 = vmatpush1.bf16.msra.mxu0 %v906
        %912 = vmatprep.subr.bf16.mxu0 0
        %913 = vmatpush1.bf16.msra.mxu0 0
        %914 = vmatprep.subr.bf16.mxu0 0
        %915 = vmatpush1.bf16.msra.mxu0 0
        %916 = vmatprep.subr.bf16.mxu0 0
        %917 = vmatpush1.bf16.msra.mxu0 0
        %918 = vmatprep.subr.bf16.mxu0 0
        %919 = vmatpush1.bf16.msra.mxu0 0
        %920 = vmatprep.subr.bf16.mxu0 0
        %921 = vmatpush1.bf16.msra.mxu0 0
        %922 = vmatprep.subr.bf16.mxu0 0
        %923 = vmatpush1.bf16.msra.mxu0 0
        %924 = vmatprep.subr.bf16.mxu0 0
        %925 = vmatpush1.bf16.msra.mxu0 0
        %926 = vmatprep.subr.bf16.mxu0 0
        %927 = vmatpush1.bf16.msra.mxu0 0
        %928 = vmatprep.subr.bf16.mxu0 0
        %929 = vmatpush1.bf16.msra.mxu0 0
        %930 = vmatprep.subr.bf16.mxu0 0
        %931 = vmatpush1.bf16.msra.mxu0 0
        %932 = vmatprep.subr.bf16.mxu0 0
        %933 = vmatpush1.bf16.msra.mxu0 0
        %934 = vmatprep.subr.bf16.mxu0 0
        %935 = vmatpush1.bf16.msra.mxu0 0
        %936 = vmatprep.subr.bf16.mxu0 0
        %937 = vmatpush1.bf16.msra.mxu0 0
        %938 = vmatprep.subr.bf16.mxu0 0
        %939 = vmatpush1.bf16.msra.mxu0 0
        %940 = vmatprep.mubr.bf16.mxu0 0
        %941 = vmatmul.mubr.bf16.gmra.mrb[0].mxu0 %v903
        %v942 = vpop.f32.mrb[0].mxu0
        %v943 = vadd.f32 0.0, %v942
        %v944 = vpop.f32.mrb[0].mxu0
        %v945 = vpop.f32.mrb[0].mxu0
        %v946 = vpop.f32.mrb[0].mxu0
        %947 = vdwg.mxu0
        %v948 = vmul.f32 %v892, %v841
        %v949 = vmul.f32 %v943, %v842
        %v950 = vpack.c.bf16 %v949, %v948
        %951 = vrot.lane.b32.xlu0 %v708, 120
        %v952 = vpop.permute.xlu0 %951
        %953 = vrot.lane.b32.xlu0 %v719, 120
        %v954 = vpop.permute.xlu0 %953
        %955 = vrot.lane.b32.xlu0 %v720, 120
        %v956 = vpop.permute.xlu0 %955
        %v958 = vsel %vm721, %v952, 0
        %v961 = vsel %vm721, %v954, 0
        %v964 = vsel %vm721, %v956, 0
        %966 = vmatprep.subr.bf16.mxu0 0
        %967 = vmatpush1.bf16.xpose.msra.mxu0 %v961
        %968 = vmatprep.subr.bf16.mxu0 0
        %969 = vmatpush1.bf16.xpose.msra.mxu0 %v964
        %970 = vmatprep.subr.bf16.mxu0 0
        %971 = vmatpush1.bf16.xpose.msra.mxu0 0
        %972 = vmatprep.subr.bf16.mxu0 0
        %973 = vmatpush1.bf16.xpose.msra.mxu0 0
        %974 = vmatprep.subr.bf16.mxu0 0
        %975 = vmatpush1.bf16.xpose.msra.mxu0 0
        %976 = vmatprep.subr.bf16.mxu0 0
        %977 = vmatpush1.bf16.xpose.msra.mxu0 0
        %978 = vmatprep.subr.bf16.mxu0 0
        %979 = vmatpush1.bf16.xpose.msra.mxu0 0
        %980 = vmatprep.subr.bf16.mxu0 0
        %981 = vmatpush1.bf16.xpose.msra.mxu0 0
        %982 = vmatprep.subr.bf16.mxu0 0
        %983 = vmatpush1.bf16.xpose.msra.mxu0 0
        %984 = vmatprep.subr.bf16.mxu0 0
        %985 = vmatpush1.bf16.xpose.msra.mxu0 0
        %986 = vmatprep.subr.bf16.mxu0 0
        %987 = vmatpush1.bf16.xpose.msra.mxu0 0
        %988 = vmatprep.subr.bf16.mxu0 0
        %989 = vmatpush1.bf16.xpose.msra.mxu0 0
        %990 = vmatprep.subr.bf16.mxu0 0
        %991 = vmatpush1.bf16.xpose.msra.mxu0 0
        %992 = vmatprep.subr.bf16.mxu0 0
        %993 = vmatpush1.bf16.xpose.msra.mxu0 0
        %994 = vmatprep.subr.bf16.mxu0 0
        %995 = vmatpush1.bf16.xpose.msra.mxu0 0
        %996 = vmatprep.subr.bf16.mxu0 0
        %997 = vmatpush1.bf16.xpose.msra.mxu0 0
        %998 = vmatprep.mubr.bf16.mxu0 0
        %999 = vmatmul.mubr.bf16.gmra.mrb[0].mxu0 %v958
        %v1000 = vpop.f32.mrb[0].mxu0
        %v1001 = vadd.f32 0.0, %v1000
        %v1002 = vpop.f32.mrb[0].mxu0
        %v1003 = vpop.f32.mrb[0].mxu0
        %v1004 = vpop.f32.mrb[0].mxu0
        %1005 = vdwg.mxu0
        %1006 = vrot.lane.b32.xlu0 %v709, 120
        %v1007 = vpop.permute.xlu0 %1006
        %1008 = vrot.lane.b32.xlu0 %v771, 120
        %v1009 = vpop.permute.xlu0 %1008
        %1010 = vrot.lane.b32.xlu0 %v772, 120
        %v1011 = vpop.permute.xlu0 %1010
        %v1013 = vsel %vm721, %v1007, 0
        %v1016 = vsel %vm721, %v1009, 0
        %v1019 = vsel %vm721, %v1011, 0
        %1021 = vmatprep.subr.bf16.mxu0 0
        %1022 = vmatpush1.bf16.xpose.msra.mxu0 %v1016
        %1023 = vmatprep.subr.bf16.mxu0 0
        %1024 = vmatpush1.bf16.xpose.msra.mxu0 %v1019
        %1025 = vmatprep.subr.bf16.mxu0 0
        %1026 = vmatpush1.bf16.xpose.msra.mxu0 0
        %1027 = vmatprep.subr.bf16.mxu0 0
        %1028 = vmatpush1.bf16.xpose.msra.mxu0 0
        %1029 = vmatprep.subr.bf16.mxu0 0
        %1030 = vmatpush1.bf16.xpose.msra.mxu0 0
        %1031 = vmatprep.subr.bf16.mxu0 0
        %1032 = vmatpush1.bf16.xpose.msra.mxu0 0
        %1033 = vmatprep.subr.bf16.mxu0 0
        %1034 = vmatpush1.bf16.xpose.msra.mxu0 0
        %1035 = vmatprep.subr.bf16.mxu0 0
        %1036 = vmatpush1.bf16.xpose.msra.mxu0 0
        %1037 = vmatprep.subr.bf16.mxu0 0
        %1038 = vmatpush1.bf16.xpose.msra.mxu0 0
        %1039 = vmatprep.subr.bf16.mxu0 0
        %1040 = vmatpush1.bf16.xpose.msra.mxu0 0
        %1041 = vmatprep.subr.bf16.mxu0 0
        %1042 = vmatpush1.bf16.xpose.msra.mxu0 0
        %1043 = vmatprep.subr.bf16.mxu0 0
        %1044 = vmatpush1.bf16.xpose.msra.mxu0 0
        %1045 = vmatprep.subr.bf16.mxu0 0
        %1046 = vmatpush1.bf16.xpose.msra.mxu0 0
        %1047 = vmatprep.subr.bf16.mxu0 0
        %1048 = vmatpush1.bf16.xpose.msra.mxu0 0
        %1049 = vmatprep.subr.bf16.mxu0 0
        %1050 = vmatpush1.bf16.xpose.msra.mxu0 0
        %1051 = vmatprep.subr.bf16.mxu0 0
        %1052 = vmatpush1.bf16.xpose.msra.mxu0 0
        %1053 = vmatprep.mubr.bf16.mxu0 0
        %1054 = vmatmul.mubr.bf16.gmra.mrb[0].mxu0 %v1013
        %v1055 = vpop.f32.mrb[0].mxu0
        %v1056 = vadd.f32 0.0, %v1055
        %v1057 = vpop.f32.mrb[0].mxu0
        %v1058 = vpop.f32.mrb[0].mxu0
        %v1059 = vpop.f32.mrb[0].mxu0
        %1060 = vdwg.mxu0
        %v1061 = vsel %vm822, %v1001, -inf
        %1062 = vmax.xlane.f32.xlu0 %v1061
        %v1063 = vpop.xlane.xlu0 %1062
        %v1064 = vsel %vm822, %v1056, -inf
        %1065 = vmax.xlane.f32.xlu0 %v1064
        %v1066 = vpop.xlane.xlu0 %1065
        %v1067 = vsub.f32 %v1001, %v1063
        %v1068 = vsub.f32 %v1056, %v1066
        %v1069 = vmul.f32 %v1067, 1.442695
        %v1070 = vpow.pop %v1069
        %v1071 = vmul.f32 %v1068, 1.442695
        %v1072 = vpow.pop %v1071
        %v1073 = vsel %vm822, %v1070, 0.0
        %1074 = vadd.xlane.f32.xlu0 %v1073
        %v1075 = vpop.xlane.xlu0 %1074
        %v1076 = vsel %vm822, %v1072, 0.0
        %1077 = vadd.xlane.f32.xlu0 %v1076
        %v1078 = vpop.xlane.xlu0 %1077
        %v1079 = vrcp.pop %v1075
        %v1080 = vrcp.pop %v1078
        %v1081 = vpack.c.bf16 %v1070, %v1070
        %v1082 = vpack.c.bf16 %v1072, %v1072
        %1083 = vrot.lane.b32.xlu0 %v719, 88
        %v1084 = vpop.permute.xlu0 %1083
        %1085 = vrot.lane.b32.xlu0 %v720, 88
        %v1086 = vpop.permute.xlu0 %1085
        %v1089 = vsel %vm822, %v1081, 0
        %v1092 = vsel %vm853, %v1086, 0
        %1094 = vmatprep.subr.bf16.mxu0 0
        %1095 = vmatpush1.bf16.msra.mxu0 %v1084
        %1096 = vmatprep.subr.bf16.mxu0 0
        %1097 = vmatpush1.bf16.msra.mxu0 %v1092
        %1098 = vmatprep.subr.bf16.mxu0 0
        %1099 = vmatpush1.bf16.msra.mxu0 0
        %1100 = vmatprep.subr.bf16.mxu0 0
        %1101 = vmatpush1.bf16.msra.mxu0 0
        %1102 = vmatprep.subr.bf16.mxu0 0
        %1103 = vmatpush1.bf16.msra.mxu0 0
        %1104 = vmatprep.subr.bf16.mxu0 0
        %1105 = vmatpush1.bf16.msra.mxu0 0
        %1106 = vmatprep.subr.bf16.mxu0 0
        %1107 = vmatpush1.bf16.msra.mxu0 0
        %1108 = vmatprep.subr.bf16.mxu0 0
        %1109 = vmatpush1.bf16.msra.mxu0 0
        %1110 = vmatprep.subr.bf16.mxu0 0
        %1111 = vmatpush1.bf16.msra.mxu0 0
        %1112 = vmatprep.subr.bf16.mxu0 0
        %1113 = vmatpush1.bf16.msra.mxu0 0
        %1114 = vmatprep.subr.bf16.mxu0 0
        %1115 = vmatpush1.bf16.msra.mxu0 0
        %1116 = vmatprep.subr.bf16.mxu0 0
        %1117 = vmatpush1.bf16.msra.mxu0 0
        %1118 = vmatprep.subr.bf16.mxu0 0
        %1119 = vmatpush1.bf16.msra.mxu0 0
        %1120 = vmatprep.subr.bf16.mxu0 0
        %1121 = vmatpush1.bf16.msra.mxu0 0
        %1122 = vmatprep.subr.bf16.mxu0 0
        %1123 = vmatpush1.bf16.msra.mxu0 0
        %1124 = vmatprep.subr.bf16.mxu0 0
        %1125 = vmatpush1.bf16.msra.mxu0 0
        %1126 = vmatprep.mubr.bf16.mxu0 0
        %1127 = vmatmul.mubr.bf16.gmra.mrb[0].mxu0 %v1089
        %v1128 = vpop.f32.mrb[0].mxu0
        %v1129 = vadd.f32 0.0, %v1128
        %v1130 = vpop.f32.mrb[0].mxu0
        %v1131 = vpop.f32.mrb[0].mxu0
        %v1132 = vpop.f32.mrb[0].mxu0
        %1133 = vdwg.mxu0
        %1134 = vrot.lane.b32.xlu0 %v771, 88
        %v1135 = vpop.permute.xlu0 %1134
        %1136 = vrot.lane.b32.xlu0 %v772, 88
        %v1137 = vpop.permute.xlu0 %1136
        %v1140 = vsel %vm822, %v1082, 0
        %v1143 = vsel %vm853, %v1137, 0
        %1145 = vmatprep.subr.bf16.mxu0 0
        %1146 = vmatpush1.bf16.msra.mxu0 %v1135
        %1147 = vmatprep.subr.bf16.mxu0 0
        %1148 = vmatpush1.bf16.msra.mxu0 %v1143
        %1149 = vmatprep.subr.bf16.mxu0 0
        %1150 = vmatpush1.bf16.msra.mxu0 0
        %1151 = vmatprep.subr.bf16.mxu0 0
        %1152 = vmatpush1.bf16.msra.mxu0 0
        %1153 = vmatprep.subr.bf16.mxu0 0
        %1154 = vmatpush1.bf16.msra.mxu0 0
        %1155 = vmatprep.subr.bf16.mxu0 0
        %1156 = vmatpush1.bf16.msra.mxu0 0
        %1157 = vmatprep.subr.bf16.mxu0 0
        %1158 = vmatpush1.bf16.msra.mxu0 0
        %1159 = vmatprep.subr.bf16.mxu0 0
        %1160 = vmatpush1.bf16.msra.mxu0 0
        %1161 = vmatprep.subr.bf16.mxu0 0
        %1162 = vmatpush1.bf16.msra.mxu0 0
        %1163 = vmatprep.subr.bf16.mxu0 0
        %1164 = vmatpush1.bf16.msra.mxu0 0
        %1165 = vmatprep.subr.bf16.mxu0 0
        %1166 = vmatpush1.bf16.msra.mxu0 0
        %1167 = vmatprep.subr.bf16.mxu0 0
        %1168 = vmatpush1.bf16.msra.mxu0 0
        %1169 = vmatprep.subr.bf16.mxu0 0
        %1170 = vmatpush1.bf16.msra.mxu0 0
        %1171 = vmatprep.subr.bf16.mxu0 0
        %1172 = vmatpush1.bf16.msra.mxu0 0
        %1173 = vmatprep.subr.bf16.mxu0 0
        %1174 = vmatpush1.bf16.msra.mxu0 0
        %1175 = vmatprep.subr.bf16.mxu0 0
        %1176 = vmatpush1.bf16.msra.mxu0 0
        %1177 = vmatprep.mubr.bf16.mxu0 0
        %1178 = vmatmul.mubr.bf16.gmra.mrb[0].mxu0 %v1140
        %v1179 = vpop.f32.mrb[0].mxu0
        %v1180 = vadd.f32 0.0, %v1179
        %v1181 = vpop.f32.mrb[0].mxu0
        %v1182 = vpop.f32.mrb[0].mxu0
        %v1183 = vpop.f32.mrb[0].mxu0
        %1184 = vdwg.mxu0
        %v1185 = vmul.f32 %v1129, %v1079
        %v1186 = vmul.f32 %v1180, %v1080
        %v1187 = vpack.c.bf16 %v1186, %v1185
        %v1189 = vsel %vm721, %v1187, 0
        %v1192 = vsel %vm853, %v702, 0
        %1194 = vmatprep.subr.bf16.mxu0 0
        %1195 = vmatpush1.bf16.msra.mxu0 %v1192
        %1196 = vmatprep.subr.bf16.mxu0 0
        %1197 = vmatpush1.bf16.msra.mxu0 0
        %1198 = vmatprep.subr.bf16.mxu0 0
        %1199 = vmatpush1.bf16.msra.mxu0 0
        %1200 = vmatprep.subr.bf16.mxu0 0
        %1201 = vmatpush1.bf16.msra.mxu0 0
        %1202 = vmatprep.subr.bf16.mxu0 0
        %1203 = vmatpush1.bf16.msra.mxu0 0
        %1204 = vmatprep.subr.bf16.mxu0 0
        %1205 = vmatpush1.bf16.msra.mxu0 0
        %1206 = vmatprep.subr.bf16.mxu0 0
        %1207 = vmatpush1.bf16.msra.mxu0 0
        %1208 = vmatprep.subr.bf16.mxu0 0
        %1209 = vmatpush1.bf16.msra.mxu0 0
        %1210 = vmatprep.subr.bf16.mxu0 0
        %1211 = vmatpush1.bf16.msra.mxu0 0
        %1212 = vmatprep.subr.bf16.mxu0 0
        %1213 = vmatpush1.bf16.msra.mxu0 0
        %1214 = vmatprep.subr.bf16.mxu0 0
        %1215 = vmatpush1.bf16.msra.mxu0 0
        %1216 = vmatprep.subr.bf16.mxu0 0
        %1217 = vmatpush1.bf16.msra.mxu0 0
        %1218 = vmatprep.subr.bf16.mxu0 0
        %1219 = vmatpush1.bf16.msra.mxu0 0
        %1220 = vmatprep.subr.bf16.mxu0 0
        %1221 = vmatpush1.bf16.msra.mxu0 0
        %1222 = vmatprep.subr.bf16.mxu0 0
        %1223 = vmatpush1.bf16.msra.mxu0 0
        %1224 = vmatprep.subr.bf16.mxu0 0
        %1225 = vmatpush1.bf16.msra.mxu0 0
        %1226 = vmatprep.mubr.bf16.mxu0 0
        %1227 = vmatmul.mubr.bf16.gmra.mrb[0].mxu0 %v1189
        %v1228 = vpop.f32.mrb[0].mxu0
        %v1229 = vadd.f32 0.0, %v1228
        %v1230 = vpop.f32.mrb[0].mxu0
        %v1231 = vpop.f32.mrb[0].mxu0
        %v1232 = vadd.f32 0.0, %v1231
        %v1233 = vpop.f32.mrb[0].mxu0
        %1234 = vdwg.mxu0
        %v1236 = vsel %vm721, %v950, 0
        %v1239 = vsel %vm853, %v701, 0
        %1241 = vmatprep.subr.bf16.mxu0 0
        %1242 = vmatpush1.bf16.msra.mxu0 %v1239
        %1243 = vmatprep.subr.bf16.mxu0 0
        %1244 = vmatpush1.bf16.msra.mxu0 0
        %1245 = vmatprep.subr.bf16.mxu0 0
        %1246 = vmatpush1.bf16.msra.mxu0 0
        %1247 = vmatprep.subr.bf16.mxu0 0
        %1248 = vmatpush1.bf16.msra.mxu0 0
        %1249 = vmatprep.subr.bf16.mxu0 0
        %1250 = vmatpush1.bf16.msra.mxu0 0
        %1251 = vmatprep.subr.bf16.mxu0 0
        %1252 = vmatpush1.bf16.msra.mxu0 0
        %1253 = vmatprep.subr.bf16.mxu0 0
        %1254 = vmatpush1.bf16.msra.mxu0 0
        %1255 = vmatprep.subr.bf16.mxu0 0
        %1256 = vmatpush1.bf16.msra.mxu0 0
        %1257 = vmatprep.subr.bf16.mxu0 0
        %1258 = vmatpush1.bf16.msra.mxu0 0
        %1259 = vmatprep.subr.bf16.mxu0 0
        %1260 = vmatpush1.bf16.msra.mxu0 0
        %1261 = vmatprep.subr.bf16.mxu0 0
        %1262 = vmatpush1.bf16.msra.mxu0 0
        %1263 = vmatprep.subr.bf16.mxu0 0
        %1264 = vmatpush1.bf16.msra.mxu0 0
        %1265 = vmatprep.subr.bf16.mxu0 0
        %1266 = vmatpush1.bf16.msra.mxu0 0
        %1267 = vmatprep.subr.bf16.mxu0 0
        %1268 = vmatpush1.bf16.msra.mxu0 0
        %1269 = vmatprep.subr.bf16.mxu0 0
        %1270 = vmatpush1.bf16.msra.mxu0 0
        %1271 = vmatprep.subr.bf16.mxu0 0
        %1272 = vmatpush1.bf16.msra.mxu0 0
        %1273 = vmatprep.mubr.bf16.mxu0 0
        %1274 = vmatmul.mubr.bf16.gmra.mrb[0].mxu0 %v1236
        %v1275 = vpop.f32.mrb[0].mxu0
        %v1276 = vadd.f32 %v1229, %v1275
        %v1277 = vpop.f32.mrb[0].mxu0
        %v1278 = vpop.f32.mrb[0].mxu0
        %v1279 = vadd.f32 %v1232, %v1278
        %v1280 = vpop.f32.mrb[0].mxu0
        %1281 = vdwg.mxu0
        %1282 = vrot.lane.b32.xlu0 %v708, 112
        %v1283 = vpop.permute.xlu0 %1282
        %1284 = vrot.lane.b32.xlu0 %v719, 112
        %v1285 = vpop.permute.xlu0 %1284
        %1286 = vrot.lane.b32.xlu0 %v720, 112
        %v1287 = vpop.permute.xlu0 %1286
        %v1289 = vsel %vm721, %v1283, 0
        %v1292 = vsel %vm721, %v1285, 0
        %v1295 = vsel %vm721, %v1287, 0
        %1297 = vmatprep.subr.bf16.mxu0 0
        %1298 = vmatpush1.bf16.xpose.msra.mxu0 %v1292
        %1299 = vmatprep.subr.bf16.mxu0 0
        %1300 = vmatpush1.bf16.xpose.msra.mxu0 %v1295
        %1301 = vmatprep.subr.bf16.mxu0 0
        %1302 = vmatpush1.bf16.xpose.msra.mxu0 0
        %1303 = vmatprep.subr.bf16.mxu0 0
        %1304 = vmatpush1.bf16.xpose.msra.mxu0 0
        %1305 = vmatprep.subr.bf16.mxu0 0
        %1306 = vmatpush1.bf16.xpose.msra.mxu0 0
        %1307 = vmatprep.subr.bf16.mxu0 0
        %1308 = vmatpush1.bf16.xpose.msra.mxu0 0
        %1309 = vmatprep.subr.bf16.mxu0 0
        %1310 = vmatpush1.bf16.xpose.msra.mxu0 0
        %1311 = vmatprep.subr.bf16.mxu0 0
        %1312 = vmatpush1.bf16.xpose.msra.mxu0 0
        %1313 = vmatprep.subr.bf16.mxu0 0
        %1314 = vmatpush1.bf16.xpose.msra.mxu0 0
        %1315 = vmatprep.subr.bf16.mxu0 0
        %1316 = vmatpush1.bf16.xpose.msra.mxu0 0
        %1317 = vmatprep.subr.bf16.mxu0 0
        %1318 = vmatpush1.bf16.xpose.msra.mxu0 0
        %1319 = vmatprep.subr.bf16.mxu0 0
        %1320 = vmatpush1.bf16.xpose.msra.mxu0 0
        %1321 = vmatprep.subr.bf16.mxu0 0
        %1322 = vmatpush1.bf16.xpose.msra.mxu0 0
        %1323 = vmatprep.subr.bf16.mxu0 0
        %1324 = vmatpush1.bf16.xpose.msra.mxu0 0
        %1325 = vmatprep.subr.bf16.mxu0 0
        %1326 = vmatpush1.bf16.xpose.msra.mxu0 0
        %1327 = vmatprep.subr.bf16.mxu0 0
        %1328 = vmatpush1.bf16.xpose.msra.mxu0 0
        %1329 = vmatprep.mubr.bf16.mxu0 0
        %1330 = vmatmul.mubr.bf16.gmra.mrb[0].mxu0 %v1289
        %v1331 = vpop.f32.mrb[0].mxu0
        %v1332 = vadd.f32 0.0, %v1331
        %v1333 = vpop.f32.mrb[0].mxu0
        %v1334 = vpop.f32.mrb[0].mxu0
        %v1335 = vpop.f32.mrb[0].mxu0
        %1336 = vdwg.mxu0
        %1337 = vrot.lane.b32.xlu0 %v709, 112
        %v1338 = vpop.permute.xlu0 %1337
        %1339 = vrot.lane.b32.xlu0 %v771, 112
        %v1340 = vpop.permute.xlu0 %1339
        %1341 = vrot.lane.b32.xlu0 %v772, 112
        %v1342 = vpop.permute.xlu0 %1341
        %v1344 = vsel %vm721, %v1338, 0
        %v1347 = vsel %vm721, %v1340, 0
        %v1350 = vsel %vm721, %v1342, 0
        %1352 = vmatprep.subr.bf16.mxu0 0
        %1353 = vmatpush1.bf16.xpose.msra.mxu0 %v1347
        %1354 = vmatprep.subr.bf16.mxu0 0
        %1355 = vmatpush1.bf16.xpose.msra.mxu0 %v1350
        %1356 = vmatprep.subr.bf16.mxu0 0
        %1357 = vmatpush1.bf16.xpose.msra.mxu0 0
        %1358 = vmatprep.subr.bf16.mxu0 0
        %1359 = vmatpush1.bf16.xpose.msra.mxu0 0
        %1360 = vmatprep.subr.bf16.mxu0 0
        %1361 = vmatpush1.bf16.xpose.msra.mxu0 0
        %1362 = vmatprep.subr.bf16.mxu0 0
        %1363 = vmatpush1.bf16.xpose.msra.mxu0 0
        %1364 = vmatprep.subr.bf16.mxu0 0
        %1365 = vmatpush1.bf16.xpose.msra.mxu0 0
        %1366 = vmatprep.subr.bf16.mxu0 0
        %1367 = vmatpush1.bf16.xpose.msra.mxu0 0
        %1368 = vmatprep.subr.bf16.mxu0 0
        %1369 = vmatpush1.bf16.xpose.msra.mxu0 0
        %1370 = vmatprep.subr.bf16.mxu0 0
        %1371 = vmatpush1.bf16.xpose.msra.mxu0 0
        %1372 = vmatprep.subr.bf16.mxu0 0
        %1373 = vmatpush1.bf16.xpose.msra.mxu0 0
        %1374 = vmatprep.subr.bf16.mxu0 0
        %1375 = vmatpush1.bf16.xpose.msra.mxu0 0
        %1376 = vmatprep.subr.bf16.mxu0 0
        %1377 = vmatpush1.bf16.xpose.msra.mxu0 0
        %1378 = vmatprep.subr.bf16.mxu0 0
        %1379 = vmatpush1.bf16.xpose.msra.mxu0 0
        %1380 = vmatprep.subr.bf16.mxu0 0
        %1381 = vmatpush1.bf16.xpose.msra.mxu0 0
        %1382 = vmatprep.subr.bf16.mxu0 0
        %1383 = vmatpush1.bf16.xpose.msra.mxu0 0
        %1384 = vmatprep.mubr.bf16.mxu0 0
        %1385 = vmatmul.mubr.bf16.gmra.mrb[0].mxu0 %v1344
        %v1386 = vpop.f32.mrb[0].mxu0
        %v1387 = vadd.f32 0.0, %v1386
        %v1388 = vpop.f32.mrb[0].mxu0
        %v1389 = vpop.f32.mrb[0].mxu0
        %v1390 = vpop.f32.mrb[0].mxu0
        %1391 = vdwg.mxu0
        %v1392 = vsel %vm822, %v1332, -inf
        %1393 = vmax.xlane.f32.xlu0 %v1392
        %v1394 = vpop.xlane.xlu0 %1393
        %v1395 = vsel %vm822, %v1387, -inf
        %1396 = vmax.xlane.f32.xlu0 %v1395
        %v1397 = vpop.xlane.xlu0 %1396
        %v1398 = vsub.f32 %v1332, %v1394
        %v1399 = vsub.f32 %v1387, %v1397
        %v1400 = vmul.f32 %v1398, 1.442695
        %v1401 = vpow.pop %v1400
        %v1402 = vmul.f32 %v1399, 1.442695
        %v1403 = vpow.pop %v1402
        %v1404 = vsel %vm822, %v1401, 0.0
        %1405 = vadd.xlane.f32.xlu0 %v1404
        %v1406 = vpop.xlane.xlu0 %1405
        %v1407 = vsel %vm822, %v1403, 0.0
        %1408 = vadd.xlane.f32.xlu0 %v1407
        %v1409 = vpop.xlane.xlu0 %1408
        %v1410 = vrcp.pop %v1406
        %v1411 = vrcp.pop %v1409
        %v1412 = vpack.c.bf16 %v1401, %v1401
        %v1413 = vpack.c.bf16 %v1403, %v1403
        %1414 = vrot.lane.b32.xlu0 %v719, 80
        %v1415 = vpop.permute.xlu0 %1414
        %1416 = vrot.lane.b32.xlu0 %v720, 80
        %v1417 = vpop.permute.xlu0 %1416
        %v1420 = vsel %vm822, %v1412, 0
        %v1423 = vsel %vm853, %v1417, 0
        %1425 = vmatprep.subr.bf16.mxu0 0
        %1426 = vmatpush1.bf16.msra.mxu0 %v1415
        %1427 = vmatprep.subr.bf16.mxu0 0
        %1428 = vmatpush1.bf16.msra.mxu0 %v1423
        %1429 = vmatprep.subr.bf16.mxu0 0
        %1430 = vmatpush1.bf16.msra.mxu0 0
        %1431 = vmatprep.subr.bf16.mxu0 0
        %1432 = vmatpush1.bf16.msra.mxu0 0
        %1433 = vmatprep.subr.bf16.mxu0 0
        %1434 = vmatpush1.bf16.msra.mxu0 0
        %1435 = vmatprep.subr.bf16.mxu0 0
        %1436 = vmatpush1.bf16.msra.mxu0 0
        %1437 = vmatprep.subr.bf16.mxu0 0
        %1438 = vmatpush1.bf16.msra.mxu0 0
        %1439 = vmatprep.subr.bf16.mxu0 0
        %1440 = vmatpush1.bf16.msra.mxu0 0
        %1441 = vmatprep.subr.bf16.mxu0 0
        %1442 = vmatpush1.bf16.msra.mxu0 0
        %1443 = vmatprep.subr.bf16.mxu0 0
        %1444 = vmatpush1.bf16.msra.mxu0 0
        %1445 = vmatprep.subr.bf16.mxu0 0
        %1446 = vmatpush1.bf16.msra.mxu0 0
        %1447 = vmatprep.subr.bf16.mxu0 0
        %1448 = vmatpush1.bf16.msra.mxu0 0
        %1449 = vmatprep.subr.bf16.mxu0 0
        %1450 = vmatpush1.bf16.msra.mxu0 0
        %1451 = vmatprep.subr.bf16.mxu0 0
        %1452 = vmatpush1.bf16.msra.mxu0 0
        %1453 = vmatprep.subr.bf16.mxu0 0
        %1454 = vmatpush1.bf16.msra.mxu0 0
        %1455 = vmatprep.subr.bf16.mxu0 0
        %1456 = vmatpush1.bf16.msra.mxu0 0
        %1457 = vmatprep.mubr.bf16.mxu0 0
        %1458 = vmatmul.mubr.bf16.gmra.mrb[0].mxu0 %v1420
        %v1459 = vpop.f32.mrb[0].mxu0
        %v1460 = vadd.f32 0.0, %v1459
        %v1461 = vpop.f32.mrb[0].mxu0
        %v1462 = vpop.f32.mrb[0].mxu0
        %v1463 = vpop.f32.mrb[0].mxu0
        %1464 = vdwg.mxu0
        %1465 = vrot.lane.b32.xlu0 %v771, 80
        %v1466 = vpop.permute.xlu0 %1465
        %1467 = vrot.lane.b32.xlu0 %v772, 80
        %v1468 = vpop.permute.xlu0 %1467
        %v1471 = vsel %vm822, %v1413, 0
        %v1474 = vsel %vm853, %v1468, 0
        %1476 = vmatprep.subr.bf16.mxu0 0
        %1477 = vmatpush1.bf16.msra.mxu0 %v1466
        %1478 = vmatprep.subr.bf16.mxu0 0
        %1479 = vmatpush1.bf16.msra.mxu0 %v1474
        %1480 = vmatprep.subr.bf16.mxu0 0
        %1481 = vmatpush1.bf16.msra.mxu0 0
        %1482 = vmatprep.subr.bf16.mxu0 0
        %1483 = vmatpush1.bf16.msra.mxu0 0
        %1484 = vmatprep.subr.bf16.mxu0 0
        %1485 = vmatpush1.bf16.msra.mxu0 0
        %1486 = vmatprep.subr.bf16.mxu0 0
        %1487 = vmatpush1.bf16.msra.mxu0 0
        %1488 = vmatprep.subr.bf16.mxu0 0
        %1489 = vmatpush1.bf16.msra.mxu0 0
        %1490 = vmatprep.subr.bf16.mxu0 0
        %1491 = vmatpush1.bf16.msra.mxu0 0
        %1492 = vmatprep.subr.bf16.mxu0 0
        %1493 = vmatpush1.bf16.msra.mxu0 0
        %1494 = vmatprep.subr.bf16.mxu0 0
        %1495 = vmatpush1.bf16.msra.mxu0 0
        %1496 = vmatprep.subr.bf16.mxu0 0
        %1497 = vmatpush1.bf16.msra.mxu0 0
        %1498 = vmatprep.subr.bf16.mxu0 0
        %1499 = vmatpush1.bf16.msra.mxu0 0
        %1500 = vmatprep.subr.bf16.mxu0 0
        %1501 = vmatpush1.bf16.msra.mxu0 0
        %1502 = vmatprep.subr.bf16.mxu0 0
        %1503 = vmatpush1.bf16.msra.mxu0 0
        %1504 = vmatprep.subr.bf16.mxu0 0
        %1505 = vmatpush1.bf16.msra.mxu0 0
        %1506 = vmatprep.subr.bf16.mxu0 0
        %1507 = vmatpush1.bf16.msra.mxu0 0
        %1508 = vmatprep.mubr.bf16.mxu0 0
        %1509 = vmatmul.mubr.bf16.gmra.mrb[0].mxu0 %v1471
        %v1510 = vpop.f32.mrb[0].mxu0
        %v1511 = vadd.f32 0.0, %v1510
        %v1512 = vpop.f32.mrb[0].mxu0
        %v1513 = vpop.f32.mrb[0].mxu0
        %v1514 = vpop.f32.mrb[0].mxu0
        %1515 = vdwg.mxu0
        %v1516 = vmul.f32 %v1460, %v1410
        %v1517 = vmul.f32 %v1511, %v1411
        %v1518 = vpack.c.bf16 %v1517, %v1516
        %v1520 = vsel %vm721, %v1518, 0
        %v1523 = vsel %vm853, %v703, 0
        %1525 = vmatprep.subr.bf16.mxu0 0
        %1526 = vmatpush1.bf16.msra.mxu0 %v1523
        %1527 = vmatprep.subr.bf16.mxu0 0
        %1528 = vmatpush1.bf16.msra.mxu0 0
        %1529 = vmatprep.subr.bf16.mxu0 0
        %1530 = vmatpush1.bf16.msra.mxu0 0
        %1531 = vmatprep.subr.bf16.mxu0 0
        %1532 = vmatpush1.bf16.msra.mxu0 0
        %1533 = vmatprep.subr.bf16.mxu0 0
        %1534 = vmatpush1.bf16.msra.mxu0 0
        %1535 = vmatprep.subr.bf16.mxu0 0
        %1536 = vmatpush1.bf16.msra.mxu0 0
        %1537 = vmatprep.subr.bf16.mxu0 0
        %1538 = vmatpush1.bf16.msra.mxu0 0
        %1539 = vmatprep.subr.bf16.mxu0 0
        %1540 = vmatpush1.bf16.msra.mxu0 0
        %1541 = vmatprep.subr.bf16.mxu0 0
        %1542 = vmatpush1.bf16.msra.mxu0 0
        %1543 = vmatprep.subr.bf16.mxu0 0
        %1544 = vmatpush1.bf16.msra.mxu0 0
        %1545 = vmatprep.subr.bf16.mxu0 0
        %1546 = vmatpush1.bf16.msra.mxu0 0
        %1547 = vmatprep.subr.bf16.mxu0 0
        %1548 = vmatpush1.bf16.msra.mxu0 0
        %1549 = vmatprep.subr.bf16.mxu0 0
        %1550 = vmatpush1.bf16.msra.mxu0 0
        %1551 = vmatprep.subr.bf16.mxu0 0
        %1552 = vmatpush1.bf16.msra.mxu0 0
        %1553 = vmatprep.subr.bf16.mxu0 0
        %1554 = vmatpush1.bf16.msra.mxu0 0
        %1555 = vmatprep.subr.bf16.mxu0 0
        %1556 = vmatpush1.bf16.msra.mxu0 0
        %1557 = vmatprep.mubr.bf16.mxu0 0
        %1558 = vmatmul.mubr.bf16.gmra.mrb[0].mxu0 %v1520
        %v1559 = vpop.f32.mrb[0].mxu0
        %v1560 = vadd.f32 0.0, %v1559
        %v1561 = vpop.f32.mrb[0].mxu0
        %v1562 = vpop.f32.mrb[0].mxu0
        %v1563 = vadd.f32 0.0, %v1562
        %v1564 = vpop.f32.mrb[0].mxu0
        %1565 = vdwg.mxu0
        %v1566 = vadd.f32 %v1276, %v1560
        %v1567 = vadd.f32 %v1279, %v1563
        %1568 = vrot.lane.b32.xlu0 %v708, 104
        %v1569 = vpop.permute.xlu0 %1568
        %1570 = vrot.lane.b32.xlu0 %v719, 104
        %v1571 = vpop.permute.xlu0 %1570
        %1572 = vrot.lane.b32.xlu0 %v720, 104
        %v1573 = vpop.permute.xlu0 %1572
        %v1575 = vsel %vm721, %v1569, 0
        %v1578 = vsel %vm721, %v1571, 0
        %v1581 = vsel %vm721, %v1573, 0
        %1583 = vmatprep.subr.bf16.mxu0 0
        %1584 = vmatpush1.bf16.xpose.msra.mxu0 %v1578
        %1585 = vmatprep.subr.bf16.mxu0 0
        %1586 = vmatpush1.bf16.xpose.msra.mxu0 %v1581
        %1587 = vmatprep.subr.bf16.mxu0 0
        %1588 = vmatpush1.bf16.xpose.msra.mxu0 0
        %1589 = vmatprep.subr.bf16.mxu0 0
        %1590 = vmatpush1.bf16.xpose.msra.mxu0 0
        %1591 = vmatprep.subr.bf16.mxu0 0
        %1592 = vmatpush1.bf16.xpose.msra.mxu0 0
        %1593 = vmatprep.subr.bf16.mxu0 0
        %1594 = vmatpush1.bf16.xpose.msra.mxu0 0
        %1595 = vmatprep.subr.bf16.mxu0 0
        %1596 = vmatpush1.bf16.xpose.msra.mxu0 0
        %1597 = vmatprep.subr.bf16.mxu0 0
        %1598 = vmatpush1.bf16.xpose.msra.mxu0 0
        %1599 = vmatprep.subr.bf16.mxu0 0
        %1600 = vmatpush1.bf16.xpose.msra.mxu0 0
        %1601 = vmatprep.subr.bf16.mxu0 0
        %1602 = vmatpush1.bf16.xpose.msra.mxu0 0
        %1603 = vmatprep.subr.bf16.mxu0 0
        %1604 = vmatpush1.bf16.xpose.msra.mxu0 0
        %1605 = vmatprep.subr.bf16.mxu0 0
        %1606 = vmatpush1.bf16.xpose.msra.mxu0 0
        %1607 = vmatprep.subr.bf16.mxu0 0
        %1608 = vmatpush1.bf16.xpose.msra.mxu0 0
        %1609 = vmatprep.subr.bf16.mxu0 0
        %1610 = vmatpush1.bf16.xpose.msra.mxu0 0
        %1611 = vmatprep.subr.bf16.mxu0 0
        %1612 = vmatpush1.bf16.xpose.msra.mxu0 0
        %1613 = vmatprep.subr.bf16.mxu0 0
        %1614 = vmatpush1.bf16.xpose.msra.mxu0 0
        %1615 = vmatprep.mubr.bf16.mxu0 0
        %1616 = vmatmul.mubr.bf16.gmra.mrb[0].mxu0 %v1575
        %v1617 = vpop.f32.mrb[0].mxu0
        %v1618 = vadd.f32 0.0, %v1617
        %v1619 = vpop.f32.mrb[0].mxu0
        %v1620 = vpop.f32.mrb[0].mxu0
        %v1621 = vpop.f32.mrb[0].mxu0
        %1622 = vdwg.mxu0
        %1623 = vrot.lane.b32.xlu0 %v709, 104
        %v1624 = vpop.permute.xlu0 %1623
        %1625 = vrot.lane.b32.xlu0 %v771, 104
        %v1626 = vpop.permute.xlu0 %1625
        %1627 = vrot.lane.b32.xlu0 %v772, 104
        %v1628 = vpop.permute.xlu0 %1627
        %v1630 = vsel %vm721, %v1624, 0
        %v1633 = vsel %vm721, %v1626, 0
        %v1636 = vsel %vm721, %v1628, 0
        %1638 = vmatprep.subr.bf16.mxu0 0
        %1639 = vmatpush1.bf16.xpose.msra.mxu0 %v1633
        %1640 = vmatprep.subr.bf16.mxu0 0
        %1641 = vmatpush1.bf16.xpose.msra.mxu0 %v1636
        %1642 = vmatprep.subr.bf16.mxu0 0
        %1643 = vmatpush1.bf16.xpose.msra.mxu0 0
        %1644 = vmatprep.subr.bf16.mxu0 0
        %1645 = vmatpush1.bf16.xpose.msra.mxu0 0
        %1646 = vmatprep.subr.bf16.mxu0 0
        %1647 = vmatpush1.bf16.xpose.msra.mxu0 0
        %1648 = vmatprep.subr.bf16.mxu0 0
        %1649 = vmatpush1.bf16.xpose.msra.mxu0 0
        %1650 = vmatprep.subr.bf16.mxu0 0
        %1651 = vmatpush1.bf16.xpose.msra.mxu0 0
        %1652 = vmatprep.subr.bf16.mxu0 0
        %1653 = vmatpush1.bf16.xpose.msra.mxu0 0
        %1654 = vmatprep.subr.bf16.mxu0 0
        %1655 = vmatpush1.bf16.xpose.msra.mxu0 0
        %1656 = vmatprep.subr.bf16.mxu0 0
        %1657 = vmatpush1.bf16.xpose.msra.mxu0 0
        %1658 = vmatprep.subr.bf16.mxu0 0
        %1659 = vmatpush1.bf16.xpose.msra.mxu0 0
        %1660 = vmatprep.subr.bf16.mxu0 0
        %1661 = vmatpush1.bf16.xpose.msra.mxu0 0
        %1662 = vmatprep.subr.bf16.mxu0 0
        %1663 = vmatpush1.bf16.xpose.msra.mxu0 0
        %1664 = vmatprep.subr.bf16.mxu0 0
        %1665 = vmatpush1.bf16.xpose.msra.mxu0 0
        %1666 = vmatprep.subr.bf16.mxu0 0
        %1667 = vmatpush1.bf16.xpose.msra.mxu0 0
        %1668 = vmatprep.subr.bf16.mxu0 0
        %1669 = vmatpush1.bf16.xpose.msra.mxu0 0
        %1670 = vmatprep.mubr.bf16.mxu0 0
        %1671 = vmatmul.mubr.bf16.gmra.mrb[0].mxu0 %v1630
        %v1672 = vpop.f32.mrb[0].mxu0
        %v1673 = vadd.f32 0.0, %v1672
        %v1674 = vpop.f32.mrb[0].mxu0
        %v1675 = vpop.f32.mrb[0].mxu0
        %v1676 = vpop.f32.mrb[0].mxu0
        %1677 = vdwg.mxu0
        %v1678 = vsel %vm822, %v1618, -inf
        %1679 = vmax.xlane.f32.xlu0 %v1678
        %v1680 = vpop.xlane.xlu0 %1679
        %v1681 = vsel %vm822, %v1673, -inf
        %1682 = vmax.xlane.f32.xlu0 %v1681
        %v1683 = vpop.xlane.xlu0 %1682
        %v1684 = vsub.f32 %v1618, %v1680
        %v1685 = vsub.f32 %v1673, %v1683
        %v1686 = vmul.f32 %v1684, 1.442695
        %v1687 = vpow.pop %v1686
        %v1688 = vmul.f32 %v1685, 1.442695
        %v1689 = vpow.pop %v1688
        %v1690 = vsel %vm822, %v1687, 0.0
        %1691 = vadd.xlane.f32.xlu0 %v1690
        %v1692 = vpop.xlane.xlu0 %1691
        %v1693 = vsel %vm822, %v1689, 0.0
        %1694 = vadd.xlane.f32.xlu0 %v1693
        %v1695 = vpop.xlane.xlu0 %1694
        %v1696 = vrcp.pop %v1692
        %v1697 = vrcp.pop %v1695
        %v1698 = vpack.c.bf16 %v1687, %v1687
        %v1699 = vpack.c.bf16 %v1689, %v1689
        %1700 = vrot.lane.b32.xlu0 %v719, 72
        %v1701 = vpop.permute.xlu0 %1700
        %1702 = vrot.lane.b32.xlu0 %v720, 72
        %v1703 = vpop.permute.xlu0 %1702
        %v1706 = vsel %vm822, %v1698, 0
        %v1709 = vsel %vm853, %v1703, 0
        %1711 = vmatprep.subr.bf16.mxu0 0
        %1712 = vmatpush1.bf16.msra.mxu0 %v1701
        %1713 = vmatprep.subr.bf16.mxu0 0
        %1714 = vmatpush1.bf16.msra.mxu0 %v1709
        %1715 = vmatprep.subr.bf16.mxu0 0
        %1716 = vmatpush1.bf16.msra.mxu0 0
        %1717 = vmatprep.subr.bf16.mxu0 0
        %1718 = vmatpush1.bf16.msra.mxu0 0
        %1719 = vmatprep.subr.bf16.mxu0 0
        %1720 = vmatpush1.bf16.msra.mxu0 0
        %1721 = vmatprep.subr.bf16.mxu0 0
        %1722 = vmatpush1.bf16.msra.mxu0 0
        %1723 = vmatprep.subr.bf16.mxu0 0
        %1724 = vmatpush1.bf16.msra.mxu0 0
        %1725 = vmatprep.subr.bf16.mxu0 0
        %1726 = vmatpush1.bf16.msra.mxu0 0
        %1727 = vmatprep.subr.bf16.mxu0 0
        %1728 = vmatpush1.bf16.msra.mxu0 0
        %1729 = vmatprep.subr.bf16.mxu0 0
        %1730 = vmatpush1.bf16.msra.mxu0 0
        %1731 = vmatprep.subr.bf16.mxu0 0
        %1732 = vmatpush1.bf16.msra.mxu0 0
        %1733 = vmatprep.subr.bf16.mxu0 0
        %1734 = vmatpush1.bf16.msra.mxu0 0
        %1735 = vmatprep.subr.bf16.mxu0 0
        %1736 = vmatpush1.bf16.msra.mxu0 0
        %1737 = vmatprep.subr.bf16.mxu0 0
        %1738 = vmatpush1.bf16.msra.mxu0 0
        %1739 = vmatprep.subr.bf16.mxu0 0
        %1740 = vmatpush1.bf16.msra.mxu0 0
        %1741 = vmatprep.subr.bf16.mxu0 0
        %1742 = vmatpush1.bf16.msra.mxu0 0
        %1743 = vmatprep.mubr.bf16.mxu0 0
        %1744 = vmatmul.mubr.bf16.gmra.mrb[0].mxu0 %v1706
        %v1745 = vpop.f32.mrb[0].mxu0
        %v1746 = vadd.f32 0.0, %v1745
        %v1747 = vpop.f32.mrb[0].mxu0
        %v1748 = vpop.f32.mrb[0].mxu0
        %v1749 = vpop.f32.mrb[0].mxu0
        %1750 = vdwg.mxu0
        %1751 = vrot.lane.b32.xlu0 %v771, 72
        %v1752 = vpop.permute.xlu0 %1751
        %1753 = vrot.lane.b32.xlu0 %v772, 72
        %v1754 = vpop.permute.xlu0 %1753
        %v1757 = vsel %vm822, %v1699, 0
        %v1760 = vsel %vm853, %v1754, 0
        %1762 = vmatprep.subr.bf16.mxu0 0
        %1763 = vmatpush1.bf16.msra.mxu0 %v1752
        %1764 = vmatprep.subr.bf16.mxu0 0
        %1765 = vmatpush1.bf16.msra.mxu0 %v1760
        %1766 = vmatprep.subr.bf16.mxu0 0
        %1767 = vmatpush1.bf16.msra.mxu0 0
        %1768 = vmatprep.subr.bf16.mxu0 0
        %1769 = vmatpush1.bf16.msra.mxu0 0
        %1770 = vmatprep.subr.bf16.mxu0 0
        %1771 = vmatpush1.bf16.msra.mxu0 0
        %1772 = vmatprep.subr.bf16.mxu0 0
        %1773 = vmatpush1.bf16.msra.mxu0 0
        %1774 = vmatprep.subr.bf16.mxu0 0
        %1775 = vmatpush1.bf16.msra.mxu0 0
        %1776 = vmatprep.subr.bf16.mxu0 0
        %1777 = vmatpush1.bf16.msra.mxu0 0
        %1778 = vmatprep.subr.bf16.mxu0 0
        %1779 = vmatpush1.bf16.msra.mxu0 0
        %1780 = vmatprep.subr.bf16.mxu0 0
        %1781 = vmatpush1.bf16.msra.mxu0 0
        %1782 = vmatprep.subr.bf16.mxu0 0
        %1783 = vmatpush1.bf16.msra.mxu0 0
        %1784 = vmatprep.subr.bf16.mxu0 0
        %1785 = vmatpush1.bf16.msra.mxu0 0
        %1786 = vmatprep.subr.bf16.mxu0 0
        %1787 = vmatpush1.bf16.msra.mxu0 0
        %1788 = vmatprep.subr.bf16.mxu0 0
        %1789 = vmatpush1.bf16.msra.mxu0 0
        %1790 = vmatprep.subr.bf16.mxu0 0
        %1791 = vmatpush1.bf16.msra.mxu0 0
        %1792 = vmatprep.subr.bf16.mxu0 0
        %1793 = vmatpush1.bf16.msra.mxu0 0
        %1794 = vmatprep.mubr.bf16.mxu0 0
        %1795 = vmatmul.mubr.bf16.gmra.mrb[0].mxu0 %v1757
        %v1796 = vpop.f32.mrb[0].mxu0
        %v1797 = vadd.f32 0.0, %v1796
        %v1798 = vpop.f32.mrb[0].mxu0
        %v1799 = vpop.f32.mrb[0].mxu0
        %v1800 = vpop.f32.mrb[0].mxu0
        %1801 = vdwg.mxu0
        %v1802 = vmul.f32 %v1746, %v1696
        %v1803 = vmul.f32 %v1797, %v1697
        %v1804 = vpack.c.bf16 %v1803, %v1802
        %v1806 = vsel %vm721, %v1804, 0
        %v1809 = vsel %vm853, %v704, 0
        %1811 = vmatprep.subr.bf16.mxu0 0
        %1812 = vmatpush1.bf16.msra.mxu0 %v1809
        %1813 = vmatprep.subr.bf16.mxu0 0
        %1814 = vmatpush1.bf16.msra.mxu0 0
        %1815 = vmatprep.subr.bf16.mxu0 0
        %1816 = vmatpush1.bf16.msra.mxu0 0
        %1817 = vmatprep.subr.bf16.mxu0 0
        %1818 = vmatpush1.bf16.msra.mxu0 0
        %1819 = vmatprep.subr.bf16.mxu0 0
        %1820 = vmatpush1.bf16.msra.mxu0 0
        %1821 = vmatprep.subr.bf16.mxu0 0
        %1822 = vmatpush1.bf16.msra.mxu0 0
        %1823 = vmatprep.subr.bf16.mxu0 0
        %1824 = vmatpush1.bf16.msra.mxu0 0
        %1825 = vmatprep.subr.bf16.mxu0 0
        %1826 = vmatpush1.bf16.msra.mxu0 0
        %1827 = vmatprep.subr.bf16.mxu0 0
        %1828 = vmatpush1.bf16.msra.mxu0 0
        %1829 = vmatprep.subr.bf16.mxu0 0
        %1830 = vmatpush1.bf16.msra.mxu0 0
        %1831 = vmatprep.subr.bf16.mxu0 0
        %1832 = vmatpush1.bf16.msra.mxu0 0
        %1833 = vmatprep.subr.bf16.mxu0 0
        %1834 = vmatpush1.bf16.msra.mxu0 0
        %1835 = vmatprep.subr.bf16.mxu0 0
        %1836 = vmatpush1.bf16.msra.mxu0 0
        %1837 = vmatprep.subr.bf16.mxu0 0
        %1838 = vmatpush1.bf16.msra.mxu0 0
        %1839 = vmatprep.subr.bf16.mxu0 0
        %1840 = vmatpush1.bf16.msra.mxu0 0
        %1841 = vmatprep.subr.bf16.mxu0 0
        %1842 = vmatpush1.bf16.msra.mxu0 0
        %1843 = vmatprep.mubr.bf16.mxu0 0
        %1844 = vmatmul.mubr.bf16.gmra.mrb[0].mxu0 %v1806
        %v1845 = vpop.f32.mrb[0].mxu0
        %v1846 = vadd.f32 0.0, %v1845
        %v1847 = vpop.f32.mrb[0].mxu0
        %v1848 = vpop.f32.mrb[0].mxu0
        %v1849 = vadd.f32 0.0, %v1848
        %v1850 = vpop.f32.mrb[0].mxu0
        %1851 = vdwg.mxu0
        %v1852 = vadd.f32 %v1566, %v1846
        %v1853 = vadd.f32 %v1567, %v1849
        %1854 = vst.msk [vmem:[%s420] sm:$0xff] %vm431, %v1852
        %1855 = vst.msk [vmem:[%s420 + $0x8] sm:$0xff] %vm431, %v1853
        %s1856 = sand.u32 %s237, 1
        %s1857 = scalar_lea.sflag [#allocation4], %s1856
        %s1858 = sand.u32 %s237, 1
        %s1859 = smul.addr %s1858, 16
        %s1860 = scalar_lea.vmem [#allocation10], %s1859
        // Predicated region
        $region73: #{tpu_custom_call.1} parent=55 // pred_check
          %p1861 = pneg %p247
        $region74: #{tpu_custom_call.1} parent=55 // pred_check_branch
          %1863 = sbr.rel (%p1861) target = $region76
        $region75: #{tpu_custom_call.1} parent=55 // pred_region
          %s1864 = smul.u32 2, %s30
          %s1866 = ssub.s32 256, 256
          %1867 = vsyncadd %s1857, %s1866
          %s1868 = smul.addr %s1864, 128
          %s1869 = scalar_lea.hbm %s9, %s1868
          %s1870 = sshll.u32 %s1860, 4
          %s1871 = int_to_ptr.vmem [resolvable:$true] %s1870
          %1876 = dma.vmem_to_hbm [thread:$0]  %s1871, 256, %s1869, %s1857, 128, 128, 8
        $region76: #{tpu_custom_call.1} parent=55 // pred_fallthru
          _
      $region56: #{tpu_custom_call.1} parent=5 // pred_fallthru
        _
      %p1877 = scmp.le.s32.totalorder 2, %s25
      // Predicated region
      $region77: #{tpu_custom_call.1} parent=5 // pred_check
        %p1878 = pneg %p1877
      $region78: #{tpu_custom_call.1} parent=5 // pred_check_branch
        %1880 = sbr.rel (%p1878) target = $region80
      $region79: #{tpu_custom_call.1} parent=5 // pred_region
        %s1881 = ssub.s32 %s25, 2
        // Predicated region
        $region81: #{tpu_custom_call.1} parent=79 // pred_check
          %p1882 = pneg %p253
        $region82: #{tpu_custom_call.1} parent=79 // pred_check_branch
          %1884 = sbr.rel (%p1882) target = $region84
        $region83: #{tpu_custom_call.1} parent=79 // pred_region
          %s1885 = sand.u32 %s238, 1
          %s1886 = scalar_lea.sflag [#allocation4], %s1885
          %s1887 = sand.u32 %s238, 1
          %s1888 = smul.addr %s1887, 16
          %s1889 = scalar_lea.vmem [#allocation10], %s1888
          %1890 = dma.done %s1886, 256
        $region84: #{tpu_custom_call.1} parent=79 // pred_fallthru
          _
      $region80: #{tpu_custom_call.1} parent=5 // pred_fallthru
        _
    $region6: #{tpu_custom_call.1} parent=1 // loop_footer
      %s29 = sadd.s32 1, %s25
    $region7: #{tpu_custom_call.1} parent=1 // loop_footer_branch
      %24 = sbr.rel target = $region3
    $region8: #{tpu_custom_call.1} parent=1 // loop_exit
      _
    %1891 = vsyncpa [#allocation3], 1
    %s1892 = scalar_lea.sflag [#allocation3], 1
    %1893 = vsyncpa %s1892, 1
    %1894 = vsyncpa [#allocation6], 1
    %s1895 = scalar_lea.sflag [#allocation6], 1
    %1896 = vsyncpa %s1895, 1
    %1897 = vsyncpa [#allocation9], 1
    %1898 = vsyncpa [#allocation4], 1
    %s1899 = scalar_lea.sflag [#allocation4], 1
    %1900 = vsyncpa %s1899, 1

</llo_original>
